<compile_context>
chip_gen: v6e
topology: v6e:2x2x1
jax: 0.10.0
libtpu: 0.0.40
codegen_flags: <defaults>
</compile_context>

<pallas_src>
import functools

import jax
import jax.numpy as jnp
from jax.experimental import pallas as pl
from jax.experimental.pallas import tpu as pltpu


# ----------------------------------------------------------------------------- helpers

def _layernorm(x, w, b, eps=1e-5):
    mu = jnp.mean(x, axis=-1, keepdims=True)
    var = jnp.mean((x - mu) ** 2, axis=-1, keepdims=True)
    return (x - mu) * jax.lax.rsqrt(var + eps) * w + b


def _device_kind():
    try:
        return jax.devices()[0].device_kind.lower()
    except Exception:
        return ""


def _vmem_limit_bytes():
    # Generation-aware VMEM budget: 3/4 of physical capacity, capped at 100 MiB.
    # v7x: 64 MiB physical -> 48 MiB; v5e/v6e: 128 MiB physical -> 96 MiB.
    try:
        cap = pltpu.get_tpu_info().vmem_capacity_bytes
    except Exception:
        cap = 64 * 1024 * 1024          # conservative fallback (safe on all gens)
    return min(int(cap * 3 // 4), 100 * 1024 * 1024)


def _pick_bb(B, Tp, multi_core):
    # Batch elements folded per grid step so the GEMM M dimension (bb*Tp) reaches
    # ~512 rows (two 256-row MXU passes on v6e/v7x).  On single-TC chips
    # (v5e/v6e) the grid is a purely sequential loop, so we never shrink M to get
    # more grid steps; only on v7x (2 TCs) do we keep >=2 parallel steps, and only
    # if that still leaves M >= 256.
    divs = [d for d in range(1, B + 1) if B % d == 0]
    bb = next((d for d in divs if d * Tp >= 512), B)
    if multi_core and B // bb < 2:
        cands = [d for d in divs if B // d >= 2 and d * Tp >= 256]
        if cands:
            bb = max(cands)
    return bb


# ----------------------------------------------------------------------------- kernels

def transformer_kernel(x_ref,
                       ln1w_ref, ln1b_ref, wqkv_ref, bqkv_ref, wo_ref, bo_ref,
                       ln2w_ref, ln2b_ref, wfc_ref, bfc_ref, wpr_ref, bpr_ref,
                       o_ref, *, n_head, gelu_bf16):
    BB, Tp, D = o_ref.shape
    dh = D // n_head
    M = BB * Tp
    layer = pl.program_id(1)

    # Residual stream lives in the (revisited) output block: initialize it from the
    # embedded tokens at layer 0, then carry it in VMEM across the whole layer axis.
    @pl.when(layer == 0)
    def _():
        o_ref[...] = x_ref[...]

    x = o_ref[...].reshape(M, D)                     # f32 residual, VMEM-resident

    # Additive causal mask built in-kernel (no (T,T) DMA).  Large-finite negative so
    # padded query rows (which always keep the diagonal) never produce NaNs.
    row = jax.lax.broadcasted_iota(jnp.int32, (Tp, Tp), 0)
    col = jax.lax.broadcasted_iota(jnp.int32, (Tp, Tp), 1)
    mask = jnp.where(col > row, jnp.float32(-1e30), jnp.float32(0.0))

    # ---- multi-head self attention (ln_1 -> attn -> residual) ----
    h = _layernorm(x, ln1w_ref[...], ln1b_ref[...]).astype(jnp.bfloat16)
    qkv = jnp.dot(h, wqkv_ref[...], preferred_element_type=jnp.float32) + bqkv_ref[...]
    qkv = qkv.reshape(BB, Tp, 3 * D).astype(jnp.bfloat16)

    # Head-major (n_head*BB, Tp, dh) operands so q.kT and p.v are each a SINGLE
    # dot_general batched over the collapsed (head, batch) dim.
    def head_major(col0):
        return jnp.concatenate(
            [qkv[:, :, col0 + hi * dh: col0 + (hi + 1) * dh] for hi in range(n_head)],
            axis=0)

    q = head_major(0)          # 1/sqrt(dh) already folded into W_qkv's Q columns
    k = head_major(D)
    v = head_major(2 * D)

    s = jax.lax.dot_general(q, k, (((2,), (2,)), ((0,), (0,))),
                            preferred_element_type=jnp.float32)      # (H*BB, Tp, Tp)
    s = s + mask[None]
    m = jnp.max(s, axis=-1, keepdims=True)
    e = jnp.exp(s - m)
    p = e * pl.reciprocal(jnp.sum(e, axis=-1, keepdims=True), approx=True)
    ctx = jax.lax.dot_general(p.astype(jnp.bfloat16), v,
                              (((2,), (1,)), ((0,), (0,))),
                              preferred_element_type=jnp.float32)    # (H*BB, Tp, dh)

    # head-major -> token-major (BB*Tp, D), then ONE K=D output-projection GEMM
    # (no per-head K=dh matmuls / f32 accumulator round trips).
    ctx = ctx.reshape(n_head, BB, Tp, dh)
    ctx = jnp.concatenate([ctx[hi] for hi in range(n_head)], axis=-1)  # (BB, Tp, D)
    ctx = ctx.reshape(M, D).astype(jnp.bfloat16)
    attn = jnp.dot(ctx, wo_ref[...], preferred_element_type=jnp.float32) + bo_ref[...]

    x = x + attn

    # ---- MLP (ln_2 -> c_fc -> QuickGELU -> c_proj -> residual) ----
    h2 = _layernorm(x, ln2w_ref[...], ln2b_ref[...]).astype(jnp.bfloat16)
    ff = jnp.dot(h2, wfc_ref[...], preferred_element_type=jnp.float32) + bfc_ref[...]
    if gelu_bf16:
        # v6e/v7x: bf16 VPU/EUP -> halve elementwise+transcendental work on the
        # widest (M, 4D) activation.
        ffb = ff.astype(jnp.bfloat16)
        ff = ffb * jax.nn.sigmoid(1.702 * ffb)
    else:
        # v5e: no bf16 VPU/EUP -> keep QuickGELU in f32.
        ff = (ff * jax.nn.sigmoid(1.702 * ff)).astype(jnp.bfloat16)
    mlp = jnp.dot(ff, wpr_ref[...], preferred_element_type=jnp.float32) + bpr_ref[...]

    o_ref[...] = (x + mlp).reshape(BB, Tp, D)


def final_kernel(x_ref, lnw_ref, lnb_ref, wproj_ref, bproj_ref, o_ref):
    # ln_final + text_projection (nn.Linear, i.e. with bias) on the gathered EOT tokens.
    h = _layernorm(x_ref[...], lnw_ref[...], lnb_ref[...]).astype(jnp.bfloat16)
    o_ref[...] = jnp.dot(h, wproj_ref[...],
                         preferred_element_type=jnp.float32) + bproj_ref[...]


# ----------------------------------------------------------------------------- wrappers

def run_transformer(x, blocks, *, n_head, bb, gelu_bf16, vmem_limit):
    B, Tp, D = x.shape
    L = blocks["w_qkv"].shape[0]
    nb = B // bb

    xmap = lambda b, l: (b, 0, 0)        # residual block: fixed across the layer axis
    wmap = lambda b, l: (l, 0, 0)        # per-layer weights: next layer prefetched

    in_specs = [
        pl.BlockSpec((bb, Tp, D), xmap),
        pl.BlockSpec((None, 1, D), wmap),           # ln1_w
        pl.BlockSpec((None, 1, D), wmap),           # ln1_b
        pl.BlockSpec((None, D, 3 * D), wmap),       # w_qkv
        pl.BlockSpec((None, 1, 3 * D), wmap),       # b_qkv
        pl.BlockSpec((None, D, D), wmap),           # w_o
        pl.BlockSpec((None, 1, D), wmap),           # b_o
        pl.BlockSpec((None, 1, D), wmap),           # ln2_w
        pl.BlockSpec((None, 1, D), wmap),           # ln2_b
        pl.BlockSpec((None, D, 4 * D), wmap),       # w_fc
        pl.BlockSpec((None, 1, 4 * D), wmap),       # b_fc
        pl.BlockSpec((None, 4 * D, D), wmap),       # w_pr
        pl.BlockSpec((None, 1, D), wmap),           # b_pr
    ]

    return pl.pallas_call(
        functools.partial(transformer_kernel, n_head=n_head, gelu_bf16=gelu_bf16),
        out_shape=jax.ShapeDtypeStruct((B, Tp, D), jnp.float32),
        grid=(nb, L),
        in_specs=in_specs,
        out_specs=pl.BlockSpec((bb, Tp, D), xmap),
        input_output_aliases={0: 0},                # residual in/out share the HBM buffer
        compiler_params=pltpu.CompilerParams(
            dimension_semantics=("parallel", "arbitrary"),
            vmem_limit_bytes=vmem_limit),
    )(x,
      blocks["ln1_w"], blocks["ln1_b"], blocks["w_qkv"], blocks["b_qkv"],
      blocks["w_o"], blocks["b_o"], blocks["ln2_w"], blocks["ln2_b"],
      blocks["w_fc"], blocks["b_fc"], blocks["w_pr"], blocks["b_pr"])


def run_final(x_eot, lnw, lnb, wproj, bproj):
    B, _ = x_eot.shape
    E = wproj.shape[1]
    return pl.pallas_call(
        final_kernel,
        out_shape=jax.ShapeDtypeStruct((B, E), jnp.float32),
    )(x_eot, lnw, lnb, wproj, bproj)


# ----------------------------------------------------------------------------- params

def init_params(key, *, vocab_size, width, context_length, layers, heads, embed_dim):
    D = width
    dh = D // heads
    q_scale = 1.0 / (dh ** 0.5)
    proj_std = (D ** -0.5) * ((2 * layers) ** -0.5)
    attn_std = D ** -0.5
    fc_std = (2 * D) ** -0.5

    keys = jax.random.split(key, 3 + 4 * layers)
    ki = iter(keys)

    params = {
        "token_embedding": 0.02 * jax.random.normal(next(ki), (vocab_size, D), jnp.float32),
        "positional_embedding": 0.02 * jax.random.normal(next(ki), (context_length, D), jnp.float32),
        "ln_f_w": jnp.ones((1, D), jnp.float32),
        "ln_f_b": jnp.zeros((1, D), jnp.float32),
        # text_projection nn.Linear(D, embed_dim) — weight pre-transposed (y = x @ W + b),
        # stored bf16 for the MXU; bias kept f32.
        "w_text": ((D ** -0.5) * jax.random.normal(next(ki), (D, embed_dim), jnp.float32)
                   ).astype(jnp.bfloat16),
        "b_text": jnp.zeros((1, embed_dim), jnp.float32),
    }

    w_qkv, w_o, w_fc, w_pr = [], [], [], []
    for _ in range(layers):
        k1, k2, k3, k4 = next(ki), next(ki), next(ki), next(ki)
        wq = attn_std * jax.random.normal(k1, (D, 3 * D), jnp.float32)
        # fold 1/sqrt(dh) into the Q output columns (static weights) so the kernel
        # never spends a (M, D) VPU multiply on the attention scale.
        wq = wq.at[:, :D].multiply(q_scale)
        w_qkv.append(wq.astype(jnp.bfloat16))
        w_o.append((proj_std * jax.random.normal(k2, (D, D), jnp.float32)).astype(jnp.bfloat16))
        w_fc.append((fc_std * jax.random.normal(k3, (D, 4 * D), jnp.float32)).astype(jnp.bfloat16))
        w_pr.append((proj_std * jax.random.normal(k4, (4 * D, D), jnp.float32)).astype(jnp.bfloat16))

    L = layers
    params["blocks"] = {
        "ln1_w": jnp.ones((L, 1, D), jnp.float32),
        "ln1_b": jnp.zeros((L, 1, D), jnp.float32),
        "w_qkv": jnp.stack(w_qkv),                       # (L, D, 3D) bf16, Q cols pre-scaled
        # NOTE: the Q third of b_qkv must carry the same folded 1/sqrt(dh); it is
        # zero-initialised here (PyTorch zero-inits in_proj_bias) so this is a no-op.
        "b_qkv": jnp.zeros((L, 1, 3 * D), jnp.float32),
        "w_o": jnp.stack(w_o),                           # (L, D, D) bf16
        "b_o": jnp.zeros((L, 1, D), jnp.float32),
        "ln2_w": jnp.ones((L, 1, D), jnp.float32),
        "ln2_b": jnp.zeros((L, 1, D), jnp.float32),
        "w_fc": jnp.stack(w_fc),                         # (L, D, 4D) bf16
        "b_fc": jnp.zeros((L, 1, 4 * D), jnp.float32),
        "w_pr": jnp.stack(w_pr),                         # (L, 4D, D) bf16
        "b_pr": jnp.zeros((L, 1, D), jnp.float32),
    }
    return params


# ----------------------------------------------------------------------------- forward

def clip_text_forward(tokens, params, *, n_head):
    B, T = tokens.shape
    D = params["token_embedding"].shape[1]
    assert D % n_head == 0

    # token embedding + positional embedding (JAX glue)
    x = jnp.take(params["token_embedding"], tokens, axis=0)          # (B, T, D)
    x = x + params["positional_embedding"][None]

    # pad seq to a multiple of 8 (sublane-friendly tiles); the causal mask hides the
    # padded key columns from real query rows, so real rows stay numerically exact.
    # Padded rows carry garbage but are never gathered (EOT argmax index < T).
    Tp = ((T + 7) // 8) * 8
    if Tp != T:
        x = jnp.pad(x, ((0, 0), (0, Tp - T), (0, 0)))

    kind = _device_kind()
    bb = _pick_bb(B, Tp, multi_core=("v7" in kind))
    gelu_bf16 = ("v5" not in kind)

    # all transformer layers fused into one pallas_call (residual resident in VMEM)
    x = run_transformer(x, params["blocks"], n_head=n_head, bb=bb,
                        gelu_bf16=gelu_bf16, vmem_limit=_vmem_limit_bytes())

    # EOT gather (argmax of token ids), then ln_final + text_projection.
    # LayerNorm is per-token, so gather-before-ln_final equals the reference exactly.
    eot = jnp.argmax(tokens, axis=-1)
    x_eot = x[jnp.arange(B), eot]                                    # (B, D)
    return run_final(x_eot, params["ln_f_w"], params["ln_f_b"],
                     params["w_text"], params["b_text"])


if __name__ == "__main__":
    # small shapes consistent with the module: batch=2, seq(context)=8, width=32,
    # heads=4, layers=2, vocab=64, embed_dim=16
    B, T = 2, 8
    width, heads, layers = 32, 4, 2
    vocab, embed_dim = 64, 16

    key = jax.random.PRNGKey(0)
    kp, kt = jax.random.split(key)
    params = init_params(kp, vocab_size=vocab, width=width, context_length=T,
                         layers=layers, heads=heads, embed_dim=embed_dim)

    # TODO(synk): the BPE _Tokenizer (vocab-file-based string tokenization) has no
    # Pallas equivalent; the kernel path takes pre-tokenized integer ids instead.
    tokens = jax.random.randint(kt, (B, T), 1, vocab, dtype=jnp.int32)

    fwd = jax.jit(functools.partial(clip_text_forward, n_head=heads))
    out = fwd(tokens, params)
    jax.block_until_ready(out)
    assert out.shape == (B, embed_dim) and out.dtype == jnp.float32
    print("KERNEL_OK")
</pallas_src>

<mosaic_0001>
module attributes {stable_mosaic.version = 11 : i64} {
  func.func @final_kernel(%arg0: memref<2x32xf32, #tpu.memory_space<vmem>>, %arg1: memref<1x32xf32, #tpu.memory_space<vmem>>, %arg2: memref<1x32xf32, #tpu.memory_space<vmem>>, %arg3: memref<32x16xbf16, #tpu.memory_space<vmem>>, %arg4: memref<1x16xf32, #tpu.memory_space<vmem>>, %arg5: memref<2x16xf32, #tpu.memory_space<vmem>>) attributes {dimension_semantics = [], scalar_prefetch = 0 : i64, scratch_operands = 0 : i64, tpu.core_type = #tpu.core_type<tc>} {
    %c0 = arith.constant 0 : index
    %c0_0 = arith.constant 0 : index
    %0 = vector.load %arg0[%c0, %c0_0] : memref<2x32xf32, #tpu.memory_space<vmem>>, vector<2x32xf32>
    %c0_1 = arith.constant 0 : index
    %c0_2 = arith.constant 0 : index
    %1 = vector.load %arg1[%c0_1, %c0_2] : memref<1x32xf32, #tpu.memory_space<vmem>>, vector<1x32xf32>
    %c0_3 = arith.constant 0 : index
    %c0_4 = arith.constant 0 : index
    %2 = vector.load %arg2[%c0_3, %c0_4] : memref<1x32xf32, #tpu.memory_space<vmem>>, vector<1x32xf32>
    %cst = arith.constant dense<0.000000e+00> : vector<2xf32>
    %3 = vector.multi_reduction <add>, %0, %cst [1] : vector<2x32xf32> to vector<2xf32>
    %4 = vector.shape_cast %3 : vector<2xf32> to vector<2x1xf32>
    %cst_5 = arith.constant 3.200000e+01 : f32
    %5 = vector.broadcast %cst_5 : f32 to vector<2x1xf32>
    %6 = arith.divf %4, %5 : vector<2x1xf32>
    %7 = vector.broadcast %6 : vector<2x1xf32> to vector<2x32xf32>
    %8 = arith.subf %0, %7 : vector<2x32xf32>
    %9 = arith.mulf %8, %8 : vector<2x32xf32>
    %cst_6 = arith.constant dense<0.000000e+00> : vector<2xf32>
    %10 = vector.multi_reduction <add>, %9, %cst_6 [1] : vector<2x32xf32> to vector<2xf32>
    %11 = vector.shape_cast %10 : vector<2xf32> to vector<2x1xf32>
    %cst_7 = arith.constant 3.200000e+01 : f32
    %12 = vector.broadcast %cst_7 : f32 to vector<2x1xf32>
    %13 = arith.divf %11, %12 : vector<2x1xf32>
    %14 = vector.broadcast %6 : vector<2x1xf32> to vector<2x32xf32>
    %15 = arith.subf %0, %14 : vector<2x32xf32>
    %cst_8 = arith.constant 9.99999974E-6 : f32
    %16 = vector.broadcast %cst_8 : f32 to vector<2x1xf32>
    %17 = arith.addf %13, %16 : vector<2x1xf32>
    %18 = math.rsqrt %17 : vector<2x1xf32>
    %19 = vector.broadcast %18 : vector<2x1xf32> to vector<2x32xf32>
    %20 = arith.mulf %15, %19 : vector<2x32xf32>
    %21 = vector.broadcast %1 : vector<1x32xf32> to vector<2x32xf32>
    %22 = arith.mulf %20, %21 : vector<2x32xf32>
    %23 = vector.broadcast %2 : vector<1x32xf32> to vector<2x32xf32>
    %24 = arith.addf %22, %23 : vector<2x32xf32>
    %25 = arith.truncf %24 : vector<2x32xf32> to vector<2x32xbf16>
    %c0_9 = arith.constant 0 : index
    %c0_10 = arith.constant 0 : index
    %26 = vector.load %arg3[%c0_9, %c0_10] : memref<32x16xbf16, #tpu.memory_space<vmem>>, vector<32x16xbf16>
    %cst_11 = arith.constant dense<0.000000e+00> : vector<2x16xf32>
    %27 = tpu.matmul %25, %26, %cst_11 {dimension_numbers = #tpu.dot_dimension_numbers<[1], [0], [0], [1], [0, 0, 1, 1], [], []>} : vector<2x32xbf16>, vector<32x16xbf16>, vector<2x16xf32> -> vector<2x16xf32>
    %c0_12 = arith.constant 0 : index
    %c0_13 = arith.constant 0 : index
    %28 = vector.load %arg4[%c0_12, %c0_13] : memref<1x16xf32, #tpu.memory_space<vmem>>, vector<1x16xf32>
    %29 = vector.broadcast %28 : vector<1x16xf32> to vector<2x16xf32>
    %30 = arith.addf %27, %29 : vector<2x16xf32>
    %c0_14 = arith.constant 0 : index
    %c0_15 = arith.constant 0 : index
    %31 = vector.load %arg5[%c0_14, %c0_15] : memref<2x16xf32, #tpu.memory_space<vmem>>, vector<2x16xf32>
    tpu.vector_store %arg5[%c0_14, %c0_15], %30 {strides = array<i32>} : memref<2x16xf32, #tpu.memory_space<vmem>>, vector<2x16xf32>,
    return
  }
}

module attributes {stable_mosaic.version = 11 : i64} {
  func.func @transformer_kernel(%arg0: i32, %arg1: i32, %arg2: memref<2x8x32xf32, #tpu.memory_space<vmem>>, %arg3: memref<1x1x32xf32, #tpu.memory_space<vmem>>, %arg4: memref<1x1x32xf32, #tpu.memory_space<vmem>>, %arg5: memref<1x32x96xbf16, #tpu.memory_space<vmem>>, %arg6: memref<1x1x96xf32, #tpu.memory_space<vmem>>, %arg7: memref<1x32x32xbf16, #tpu.memory_space<vmem>>, %arg8: memref<1x1x32xf32, #tpu.memory_space<vmem>>, %arg9: memref<1x1x32xf32, #tpu.memory_space<vmem>>, %arg10: memref<1x1x32xf32, #tpu.memory_space<vmem>>, %arg11: memref<1x32x128xbf16, #tpu.memory_space<vmem>>, %arg12: memref<1x1x128xf32, #tpu.memory_space<vmem>>, %arg13: memref<1x128x32xbf16, #tpu.memory_space<vmem>>, %arg14: memref<1x1x32xf32, #tpu.memory_space<vmem>>, %arg15: memref<2x8x32xf32, #tpu.memory_space<vmem>>) attributes {dimension_semantics = [#tpu.dimension_semantics<parallel>, #tpu.dimension_semantics<arbitrary>], iteration_bounds = array<i64: 1, 2>, scalar_prefetch = 0 : i64, scratch_operands = 0 : i64, tpu.core_type = #tpu.core_type<tc>, window_params = [{transform_indices = @transform_0, window_bounds = array<i64: 2, 8, 32>}, {transform_indices = @transform_1, window_bounds = array<i64: 1, 1, 32>}, {transform_indices = @transform_2, window_bounds = array<i64: 1, 1, 32>}, {transform_indices = @transform_3, window_bounds = array<i64: 1, 32, 96>}, {transform_indices = @transform_4, window_bounds = array<i64: 1, 1, 96>}, {transform_indices = @transform_5, window_bounds = array<i64: 1, 32, 32>}, {transform_indices = @transform_6, window_bounds = array<i64: 1, 1, 32>}, {transform_indices = @transform_7, window_bounds = array<i64: 1, 1, 32>}, {transform_indices = @transform_8, window_bounds = array<i64: 1, 1, 32>}, {transform_indices = @transform_9, window_bounds = array<i64: 1, 32, 128>}, {transform_indices = @transform_10, window_bounds = array<i64: 1, 1, 128>}, {transform_indices = @transform_11, window_bounds = array<i64: 1, 128, 32>}, {transform_indices = @transform_12, window_bounds = array<i64: 1, 1, 32>}, {transform_indices = @transform_13, window_bounds = array<i64: 2, 8, 32>}]} {
    %c0_i32 = arith.constant 0 : i32
    %0 = arith.cmpi eq, %arg1, %c0_i32 : i32
    %1 = arith.extui %0 : i1 to i32
    %c0_i32_0 = arith.constant 0 : i32
    %2 = arith.cmpi ne, %1, %c0_i32_0 : i32
    scf.if %2 {
      %c0_63 = arith.constant 0 : index
      %c0_64 = arith.constant 0 : index
      %c0_65 = arith.constant 0 : index
      %151 = vector.load %arg2[%c0_63, %c0_64, %c0_65] : memref<2x8x32xf32, #tpu.memory_space<vmem>>, vector<2x8x32xf32>
      %c0_66 = arith.constant 0 : index
      %c0_67 = arith.constant 0 : index
      %c0_68 = arith.constant 0 : index
      %152 = vector.load %arg15[%c0_66, %c0_67, %c0_68] : memref<2x8x32xf32, #tpu.memory_space<vmem>>, vector<2x8x32xf32>
      tpu.vector_store %arg15[%c0_66, %c0_67, %c0_68], %151 {strides = array<i32>} : memref<2x8x32xf32, #tpu.memory_space<vmem>>, vector<2x8x32xf32>,
    } else {
    }
    %c0 = arith.constant 0 : index
    %c0_1 = arith.constant 0 : index
    %c0_2 = arith.constant 0 : index
    %3 = vector.load %arg15[%c0, %c0_1, %c0_2] : memref<2x8x32xf32, #tpu.memory_space<vmem>>, vector<2x8x32xf32>
    %4 = vector.shape_cast %3 : vector<2x8x32xf32> to vector<16x32xf32>
    %5 = tpu.iota {dimensions = array<i32: 0>} : vector<8x8xi32>
    %6 = tpu.iota {dimensions = array<i32: 1>} : vector<8x8xi32>
    %7 = arith.cmpi sgt, %6, %5 : vector<8x8xi32>
    %cst = arith.constant -1.000000e+30 : f32
    %cst_3 = arith.constant 0.000000e+00 : f32
    %8 = vector.broadcast %cst : f32 to vector<8x8xf32>
    %9 = vector.broadcast %cst_3 : f32 to vector<8x8xf32>
    %10 = arith.select %7, %8, %9 : vector<8x8xi1>, vector<8x8xf32>
    %c0_4 = arith.constant 0 : index
    %c0_5 = arith.constant 0 : index
    %c0_6 = arith.constant 0 : index
    %11 = vector.load %arg3[%c0_4, %c0_5, %c0_6] : memref<1x1x32xf32, #tpu.memory_space<vmem>>, vector<1x1x32xf32>
    %12 = vector.shape_cast %11 : vector<1x1x32xf32> to vector<1x32xf32>
    %c0_7 = arith.constant 0 : index
    %c0_8 = arith.constant 0 : index
    %c0_9 = arith.constant 0 : index
    %13 = vector.load %arg4[%c0_7, %c0_8, %c0_9] : memref<1x1x32xf32, #tpu.memory_space<vmem>>, vector<1x1x32xf32>
    %14 = vector.shape_cast %13 : vector<1x1x32xf32> to vector<1x32xf32>
    %cst_10 = arith.constant dense<0.000000e+00> : vector<16xf32>
    %15 = vector.multi_reduction <add>, %4, %cst_10 [1] : vector<16x32xf32> to vector<16xf32>
    %16 = vector.shape_cast %15 : vector<16xf32> to vector<16x1xf32>
    %cst_11 = arith.constant 3.200000e+01 : f32
    %17 = vector.broadcast %cst_11 : f32 to vector<16x1xf32>
    %18 = arith.divf %16, %17 : vector<16x1xf32>
    %19 = vector.broadcast %18 : vector<16x1xf32> to vector<16x32xf32>
    %20 = arith.subf %4, %19 : vector<16x32xf32>
    %21 = arith.mulf %20, %20 : vector<16x32xf32>
    %cst_12 = arith.constant dense<0.000000e+00> : vector<16xf32>
    %22 = vector.multi_reduction <add>, %21, %cst_12 [1] : vector<16x32xf32> to vector<16xf32>
    %23 = vector.shape_cast %22 : vector<16xf32> to vector<16x1xf32>
    %cst_13 = arith.constant 3.200000e+01 : f32
    %24 = vector.broadcast %cst_13 : f32 to vector<16x1xf32>
    %25 = arith.divf %23, %24 : vector<16x1xf32>
    %26 = vector.broadcast %18 : vector<16x1xf32> to vector<16x32xf32>
    %27 = arith.subf %4, %26 : vector<16x32xf32>
    %cst_14 = arith.constant 9.99999974E-6 : f32
    %28 = vector.broadcast %cst_14 : f32 to vector<16x1xf32>
    %29 = arith.addf %25, %28 : vector<16x1xf32>
    %30 = math.rsqrt %29 : vector<16x1xf32>
    %31 = vector.broadcast %30 : vector<16x1xf32> to vector<16x32xf32>
    %32 = arith.mulf %27, %31 : vector<16x32xf32>
    %33 = vector.broadcast %12 : vector<1x32xf32> to vector<16x32xf32>
    %34 = arith.mulf %32, %33 : vector<16x32xf32>
    %35 = vector.broadcast %14 : vector<1x32xf32> to vector<16x32xf32>
    %36 = arith.addf %34, %35 : vector<16x32xf32>
    %37 = arith.truncf %36 : vector<16x32xf32> to vector<16x32xbf16>
    %c0_15 = arith.constant 0 : index
    %c0_16 = arith.constant 0 : index
    %c0_17 = arith.constant 0 : index
    %38 = vector.load %arg5[%c0_15, %c0_16, %c0_17] : memref<1x32x96xbf16, #tpu.memory_space<vmem>>, vector<1x32x96xbf16>
    %39 = vector.shape_cast %38 : vector<1x32x96xbf16> to vector<32x96xbf16>
    %cst_18 = arith.constant dense<0.000000e+00> : vector<16x96xf32>
    %40 = tpu.matmul %37, %39, %cst_18 {dimension_numbers = #tpu.dot_dimension_numbers<[1], [0], [0], [1], [0, 0, 1, 1], [], []>} : vector<16x32xbf16>, vector<32x96xbf16>, vector<16x96xf32> -> vector<16x96xf32>
    %c0_19 = arith.constant 0 : index
    %c0_20 = arith.constant 0 : index
    %c0_21 = arith.constant 0 : index
    %41 = vector.load %arg6[%c0_19, %c0_20, %c0_21] : memref<1x1x96xf32, #tpu.memory_space<vmem>>, vector<1x1x96xf32>
    %42 = vector.shape_cast %41 : vector<1x1x96xf32> to vector<1x96xf32>
    %43 = vector.broadcast %42 : vector<1x96xf32> to vector<16x96xf32>
    %44 = arith.addf %40, %43 : vector<16x96xf32>
    %45 = vector.shape_cast %44 : vector<16x96xf32> to vector<2x8x96xf32>
    %46 = arith.truncf %45 : vector<2x8x96xf32> to vector<2x8x96xbf16>
    %47 = vector.extract_strided_slice %46 {offsets = [0, 0, 0], sizes = [2, 8, 8], strides = [1, 1, 1]} : vector<2x8x96xbf16> to vector<2x8x8xbf16>
    %48 = vector.extract_strided_slice %46 {offsets = [0, 0, 8], sizes = [2, 8, 8], strides = [1, 1, 1]} : vector<2x8x96xbf16> to vector<2x8x8xbf16>
    %49 = vector.extract_strided_slice %46 {offsets = [0, 0, 16], sizes = [2, 8, 8], strides = [1, 1, 1]} : vector<2x8x96xbf16> to vector<2x8x8xbf16>
    %50 = vector.extract_strided_slice %46 {offsets = [0, 0, 24], sizes = [2, 8, 8], strides = [1, 1, 1]} : vector<2x8x96xbf16> to vector<2x8x8xbf16>
    %51 = tpu.concatenate %47, %48, %49, %50 in 0 : vector<2x8x8xbf16>, vector<2x8x8xbf16>, vector<2x8x8xbf16>, vector<2x8x8xbf16> -> vector<8x8x8xbf16>
    %52 = vector.extract_strided_slice %46 {offsets = [0, 0, 32], sizes = [2, 8, 8], strides = [1, 1, 1]} : vector<2x8x96xbf16> to vector<2x8x8xbf16>
    %53 = vector.extract_strided_slice %46 {offsets = [0, 0, 40], sizes = [2, 8, 8], strides = [1, 1, 1]} : vector<2x8x96xbf16> to vector<2x8x8xbf16>
    %54 = vector.extract_strided_slice %46 {offsets = [0, 0, 48], sizes = [2, 8, 8], strides = [1, 1, 1]} : vector<2x8x96xbf16> to vector<2x8x8xbf16>
    %55 = vector.extract_strided_slice %46 {offsets = [0, 0, 56], sizes = [2, 8, 8], strides = [1, 1, 1]} : vector<2x8x96xbf16> to vector<2x8x8xbf16>
    %56 = tpu.concatenate %52, %53, %54, %55 in 0 : vector<2x8x8xbf16>, vector<2x8x8xbf16>, vector<2x8x8xbf16>, vector<2x8x8xbf16> -> vector<8x8x8xbf16>
    %57 = vector.extract_strided_slice %46 {offsets = [0, 0, 64], sizes = [2, 8, 8], strides = [1, 1, 1]} : vector<2x8x96xbf16> to vector<2x8x8xbf16>
    %58 = vector.extract_strided_slice %46 {offsets = [0, 0, 72], sizes = [2, 8, 8], strides = [1, 1, 1]} : vector<2x8x96xbf16> to vector<2x8x8xbf16>
    %59 = vector.extract_strided_slice %46 {offsets = [0, 0, 80], sizes = [2, 8, 8], strides = [1, 1, 1]} : vector<2x8x96xbf16> to vector<2x8x8xbf16>
    %60 = vector.extract_strided_slice %46 {offsets = [0, 0, 88], sizes = [2, 8, 8], strides = [1, 1, 1]} : vector<2x8x96xbf16> to vector<2x8x8xbf16>
    %61 = tpu.concatenate %57, %58, %59, %60 in 0 : vector<2x8x8xbf16>, vector<2x8x8xbf16>, vector<2x8x8xbf16>, vector<2x8x8xbf16> -> vector<8x8x8xbf16>
    %cst_22 = arith.constant dense<0.000000e+00> : vector<8x8x8xf32>
    %62 = tpu.matmul %51, %56, %cst_22 {dimension_numbers = #tpu.dot_dimension_numbers<[2], [2], [1], [1], [0, 0, 0, 1, 1, 1], [0], [0]>} : vector<8x8x8xbf16>, vector<8x8x8xbf16>, vector<8x8x8xf32> -> vector<8x8x8xf32>
    %63 = vector.shape_cast %10 : vector<8x8xf32> to vector<1x8x8xf32>
    %64 = vector.broadcast %63 : vector<1x8x8xf32> to vector<8x8x8xf32>
    %65 = arith.addf %62, %64 : vector<8x8x8xf32>
    %cst_23 = arith.constant dense<0xFF800000> : vector<8x8xf32>
    %66 = vector.multi_reduction <maximumf>, %65, %cst_23 [2] : vector<8x8x8xf32> to vector<8x8xf32>
    %67 = vector.shape_cast %66 : vector<8x8xf32> to vector<8x8x1xf32>
    %68 = vector.broadcast %67 : vector<8x8x1xf32> to vector<8x8x8xf32>
    %69 = arith.subf %65, %68 : vector<8x8x8xf32>
    %70 = math.exp %69 : vector<8x8x8xf32>
    %cst_24 = arith.constant dense<0.000000e+00> : vector<8x8xf32>
    %71 = vector.multi_reduction <add>, %70, %cst_24 [2] : vector<8x8x8xf32> to vector<8x8xf32>
    %72 = vector.shape_cast %71 : vector<8x8xf32> to vector<8x8x1xf32>
    %73 = tpu.reciprocal %72 {approx = true} : vector<8x8x1xf32> -> vector<8x8x1xf32>
    %74 = vector.broadcast %73 : vector<8x8x1xf32> to vector<8x8x8xf32>
    %75 = arith.mulf %70, %74 : vector<8x8x8xf32>
    %76 = arith.truncf %75 : vector<8x8x8xf32> to vector<8x8x8xbf16>
    %cst_25 = arith.constant dense<0.000000e+00> : vector<8x8x8xf32>
    %77 = tpu.matmul %76, %61, %cst_25 {dimension_numbers = #tpu.dot_dimension_numbers<[2], [1], [1], [2], [0, 0, 0, 1, 1, 2], [0], [0]>} : vector<8x8x8xbf16>, vector<8x8x8xbf16>, vector<8x8x8xf32> -> vector<8x8x8xf32>
    %78 = vector.shape_cast %77 : vector<8x8x8xf32> to vector<4x2x8x8xf32>
    %79 = vector.extract_strided_slice %78 {offsets = [0, 0, 0, 0], sizes = [1, 2, 8, 8], strides = [1, 1, 1, 1]} : vector<4x2x8x8xf32> to vector<1x2x8x8xf32>
    %80 = vector.shape_cast %79 : vector<1x2x8x8xf32> to vector<2x8x8xf32>
    %81 = vector.extract_strided_slice %78 {offsets = [1, 0, 0, 0], sizes = [1, 2, 8, 8], strides = [1, 1, 1, 1]} : vector<4x2x8x8xf32> to vector<1x2x8x8xf32>
    %82 = vector.shape_cast %81 : vector<1x2x8x8xf32> to vector<2x8x8xf32>
    %83 = vector.extract_strided_slice %78 {offsets = [2, 0, 0, 0], sizes = [1, 2, 8, 8], strides = [1, 1, 1, 1]} : vector<4x2x8x8xf32> to vector<1x2x8x8xf32>
    %84 = vector.shape_cast %83 : vector<1x2x8x8xf32> to vector<2x8x8xf32>
    %85 = vector.extract_strided_slice %78 {offsets = [3, 0, 0, 0], sizes = [1, 2, 8, 8], strides = [1, 1, 1, 1]} : vector<4x2x8x8xf32> to vector<1x2x8x8xf32>
    %86 = vector.shape_cast %85 : vector<1x2x8x8xf32> to vector<2x8x8xf32>
    %87 = tpu.concatenate %80, %82, %84, %86 in 2 : vector<2x8x8xf32>, vector<2x8x8xf32>, vector<2x8x8xf32>, vector<2x8x8xf32> -> vector<2x8x32xf32>
    %88 = vector.shape_cast %87 : vector<2x8x32xf32> to vector<16x32xf32>
    %89 = arith.truncf %88 : vector<16x32xf32> to vector<16x32xbf16>
    %c0_26 = arith.constant 0 : index
    %c0_27 = arith.constant 0 : index
    %c0_28 = arith.constant 0 : index
    %90 = vector.load %arg7[%c0_26, %c0_27, %c0_28] : memref<1x32x32xbf16, #tpu.memory_space<vmem>>, vector<1x32x32xbf16>
    %91 = vector.shape_cast %90 : vector<1x32x32xbf16> to vector<32x32xbf16>
    %cst_29 = arith.constant dense<0.000000e+00> : vector<16x32xf32>
    %92 = tpu.matmul %89, %91, %cst_29 {dimension_numbers = #tpu.dot_dimension_numbers<[1], [0], [0], [1], [0, 0, 1, 1], [], []>} : vector<16x32xbf16>, vector<32x32xbf16>, vector<16x32xf32> -> vector<16x32xf32>
    %c0_30 = arith.constant 0 : index
    %c0_31 = arith.constant 0 : index
    %c0_32 = arith.constant 0 : index
    %93 = vector.load %arg8[%c0_30, %c0_31, %c0_32] : memref<1x1x32xf32, #tpu.memory_space<vmem>>, vector<1x1x32xf32>
    %94 = vector.shape_cast %93 : vector<1x1x32xf32> to vector<1x32xf32>
    %95 = vector.broadcast %94 : vector<1x32xf32> to vector<16x32xf32>
    %96 = arith.addf %92, %95 : vector<16x32xf32>
    %97 = arith.addf %4, %96 : vector<16x32xf32>
    %c0_33 = arith.constant 0 : index
    %c0_34 = arith.constant 0 : index
    %c0_35 = arith.constant 0 : index
    %98 = vector.load %arg9[%c0_33, %c0_34, %c0_35] : memref<1x1x32xf32, #tpu.memory_space<vmem>>, vector<1x1x32xf32>
    %99 = vector.shape_cast %98 : vector<1x1x32xf32> to vector<1x32xf32>
    %c0_36 = arith.constant 0 : index
    %c0_37 = arith.constant 0 : index
    %c0_38 = arith.constant 0 : index
    %100 = vector.load %arg10[%c0_36, %c0_37, %c0_38] : memref<1x1x32xf32, #tpu.memory_space<vmem>>, vector<1x1x32xf32>
    %101 = vector.shape_cast %100 : vector<1x1x32xf32> to vector<1x32xf32>
    %cst_39 = arith.constant dense<0.000000e+00> : vector<16xf32>
    %102 = vector.multi_reduction <add>, %97, %cst_39 [1] : vector<16x32xf32> to vector<16xf32>
    %103 = vector.shape_cast %102 : vector<16xf32> to vector<16x1xf32>
    %cst_40 = arith.constant 3.200000e+01 : f32
    %104 = vector.broadcast %cst_40 : f32 to vector<16x1xf32>
    %105 = arith.divf %103, %104 : vector<16x1xf32>
    %106 = vector.broadcast %105 : vector<16x1xf32> to vector<16x32xf32>
    %107 = arith.subf %97, %106 : vector<16x32xf32>
    %108 = arith.mulf %107, %107 : vector<16x32xf32>
    %cst_41 = arith.constant dense<0.000000e+00> : vector<16xf32>
    %109 = vector.multi_reduction <add>, %108, %cst_41 [1] : vector<16x32xf32> to vector<16xf32>
    %110 = vector.shape_cast %109 : vector<16xf32> to vector<16x1xf32>
    %cst_42 = arith.constant 3.200000e+01 : f32
    %111 = vector.broadcast %cst_42 : f32 to vector<16x1xf32>
    %112 = arith.divf %110, %111 : vector<16x1xf32>
    %113 = vector.broadcast %105 : vector<16x1xf32> to vector<16x32xf32>
    %114 = arith.subf %97, %113 : vector<16x32xf32>
    %cst_43 = arith.constant 9.99999974E-6 : f32
    %115 = vector.broadcast %cst_43 : f32 to vector<16x1xf32>
    %116 = arith.addf %112, %115 : vector<16x1xf32>
    %117 = math.rsqrt %116 : vector<16x1xf32>
    %118 = vector.broadcast %117 : vector<16x1xf32> to vector<16x32xf32>
    %119 = arith.mulf %114, %118 : vector<16x32xf32>
    %120 = vector.broadcast %99 : vector<1x32xf32> to vector<16x32xf32>
    %121 = arith.mulf %119, %120 : vector<16x32xf32>
    %122 = vector.broadcast %101 : vector<1x32xf32> to vector<16x32xf32>
    %123 = arith.addf %121, %122 : vector<16x32xf32>
    %124 = arith.truncf %123 : vector<16x32xf32> to vector<16x32xbf16>
    %c0_44 = arith.constant 0 : index
    %c0_45 = arith.constant 0 : index
    %c0_46 = arith.constant 0 : index
    %125 = vector.load %arg11[%c0_44, %c0_45, %c0_46] : memref<1x32x128xbf16, #tpu.memory_space<vmem>>, vector<1x32x128xbf16>
    %126 = vector.shape_cast %125 : vector<1x32x128xbf16> to vector<32x128xbf16>
    %cst_47 = arith.constant dense<0.000000e+00> : vector<16x128xf32>
    %127 = tpu.matmul %124, %126, %cst_47 {dimension_numbers = #tpu.dot_dimension_numbers<[1], [0], [0], [1], [0, 0, 1, 1], [], []>} : vector<16x32xbf16>, vector<32x128xbf16>, vector<16x128xf32> -> vector<16x128xf32>
    %c0_48 = arith.constant 0 : index
    %c0_49 = arith.constant 0 : index
    %c0_50 = arith.constant 0 : index
    %128 = vector.load %arg12[%c0_48, %c0_49, %c0_50] : memref<1x1x128xf32, #tpu.memory_space<vmem>>, vector<1x1x128xf32>
    %129 = vector.shape_cast %128 : vector<1x1x128xf32> to vector<1x128xf32>
    %130 = vector.broadcast %129 : vector<1x128xf32> to vector<16x128xf32>
    %131 = arith.addf %127, %130 : vector<16x128xf32>
    %132 = arith.truncf %131 : vector<16x128xf32> to vector<16x128xbf16>
    %cst_51 = arith.constant 1.703130e+00 : bf16
    %133 = vector.broadcast %cst_51 : bf16 to vector<16x128xbf16>
    %134 = arith.mulf %133, %132 : vector<16x128xbf16>
    %135 = arith.negf %134 : vector<16x128xbf16>
    %136 = math.exp %135 : vector<16x128xbf16>
    %cst_52 = arith.constant 1.000000e+00 : bf16
    %137 = vector.broadcast %cst_52 : bf16 to vector<16x128xbf16>
    %138 = arith.addf %137, %136 : vector<16x128xbf16>
    %139 = arith.divf %137, %138 : vector<16x128xbf16>
    %140 = arith.mulf %132, %139 : vector<16x128xbf16>
    %c0_53 = arith.constant 0 : index
    %c0_54 = arith.constant 0 : index
    %c0_55 = arith.constant 0 : index
    %141 = vector.load %arg13[%c0_53, %c0_54, %c0_55] : memref<1x128x32xbf16, #tpu.memory_space<vmem>>, vector<1x128x32xbf16>
    %142 = vector.shape_cast %141 : vector<1x128x32xbf16> to vector<128x32xbf16>
    %cst_56 = arith.constant dense<0.000000e+00> : vector<16x32xf32>
    %143 = tpu.matmul %140, %142, %cst_56 {dimension_numbers = #tpu.dot_dimension_numbers<[1], [0], [0], [1], [0, 0, 1, 1], [], []>} : vector<16x128xbf16>, vector<128x32xbf16>, vector<16x32xf32> -> vector<16x32xf32>
    %c0_57 = arith.constant 0 : index
    %c0_58 = arith.constant 0 : index
    %c0_59 = arith.constant 0 : index
    %144 = vector.load %arg14[%c0_57, %c0_58, %c0_59] : memref<1x1x32xf32, #tpu.memory_space<vmem>>, vector<1x1x32xf32>
    %145 = vector.shape_cast %144 : vector<1x1x32xf32> to vector<1x32xf32>
    %146 = vector.broadcast %145 : vector<1x32xf32> to vector<16x32xf32>
    %147 = arith.addf %143, %146 : vector<16x32xf32>
    %148 = arith.addf %97, %147 : vector<16x32xf32>
    %149 = vector.shape_cast %148 : vector<16x32xf32> to vector<2x8x32xf32>
    %c0_60 = arith.constant 0 : index
    %c0_61 = arith.constant 0 : index
    %c0_62 = arith.constant 0 : index
    %150 = vector.load %arg15[%c0_60, %c0_61, %c0_62] : memref<2x8x32xf32, #tpu.memory_space<vmem>>, vector<2x8x32xf32>
    tpu.vector_store %arg15[%c0_60, %c0_61, %c0_62], %149 {strides = array<i32>} : memref<2x8x32xf32, #tpu.memory_space<vmem>>, vector<2x8x32xf32>,
    return
  }
  func.func @transform_0(%arg0: i32, %arg1: i32) -> (i32, i32, i32) {
    %c0_i32 = arith.constant 0 : i32
    %c0_i32_0 = arith.constant 0 : i32
    %c0_i32_1 = arith.constant 0 : i32
    return %arg0, %c0_i32, %c0_i32_0 : i32, i32, i32
  }
  func.func @transform_1(%arg0: i32, %arg1: i32) -> (i32, i32, i32) {
    %c0_i32 = arith.constant 0 : i32
    %c0_i32_0 = arith.constant 0 : i32
    %c0_i32_1 = arith.constant 0 : i32
    return %arg1, %c0_i32, %c0_i32_0 : i32, i32, i32
  }
  func.func @transform_2(%arg0: i32, %arg1: i32) -> (i32, i32, i32) {
    %c0_i32 = arith.constant 0 : i32
    %c0_i32_0 = arith.constant 0 : i32
    %c0_i32_1 = arith.constant 0 : i32
    return %arg1, %c0_i32, %c0_i32_0 : i32, i32, i32
  }
  func.func @transform_3(%arg0: i32, %arg1: i32) -> (i32, i32, i32) {
    %c0_i32 = arith.constant 0 : i32
    %c0_i32_0 = arith.constant 0 : i32
    %c0_i32_1 = arith.constant 0 : i32
    return %arg1, %c0_i32, %c0_i32_0 : i32, i32, i32
  }
  func.func @transform_4(%arg0: i32, %arg1: i32) -> (i32, i32, i32) {
    %c0_i32 = arith.constant 0 : i32
    %c0_i32_0 = arith.constant 0 : i32
    %c0_i32_1 = arith.constant 0 : i32
    return %arg1, %c0_i32, %c0_i32_0 : i32, i32, i32
  }
  func.func @transform_5(%arg0: i32, %arg1: i32) -> (i32, i32, i32) {
    %c0_i32 = arith.constant 0 : i32
    %c0_i32_0 = arith.constant 0 : i32
    %c0_i32_1 = arith.constant 0 : i32
    return %arg1, %c0_i32, %c0_i32_0 : i32, i32, i32
  }
  func.func @transform_6(%arg0: i32, %arg1: i32) -> (i32, i32, i32) {
    %c0_i32 = arith.constant 0 : i32
    %c0_i32_0 = arith.constant 0 : i32
    %c0_i32_1 = arith.constant 0 : i32
    return %arg1, %c0_i32, %c0_i32_0 : i32, i32, i32
  }
  func.func @transform_7(%arg0: i32, %arg1: i32) -> (i32, i32, i32) {
    %c0_i32 = arith.constant 0 : i32
    %c0_i32_0 = arith.constant 0 : i32
    %c0_i32_1 = arith.constant 0 : i32
    return %arg1, %c0_i32, %c0_i32_0 : i32, i32, i32
  }
  func.func @transform_8(%arg0: i32, %arg1: i32) -> (i32, i32, i32) {
    %c0_i32 = arith.constant 0 : i32
    %c0_i32_0 = arith.constant 0 : i32
    %c0_i32_1 = arith.constant 0 : i32
    return %arg1, %c0_i32, %c0_i32_0 : i32, i32, i32
  }
  func.func @transform_9(%arg0: i32, %arg1: i32) -> (i32, i32, i32) {
    %c0_i32 = arith.constant 0 : i32
    %c0_i32_0 = arith.constant 0 : i32
    %c0_i32_1 = arith.constant 0 : i32
    return %arg1, %c0_i32, %c0_i32_0 : i32, i32, i32
  }
  func.func @transform_10(%arg0: i32, %arg1: i32) -> (i32, i32, i32) {
    %c0_i32 = arith.constant 0 : i32
    %c0_i32_0 = arith.constant 0 : i32
    %c0_i32_1 = arith.constant 0 : i32
    return %arg1, %c0_i32, %c0_i32_0 : i32, i32, i32
  }
  func.func @transform_11(%arg0: i32, %arg1: i32) -> (i32, i32, i32) {
    %c0_i32 = arith.constant 0 : i32
    %c0_i32_0 = arith.constant 0 : i32
    %c0_i32_1 = arith.constant 0 : i32
    return %arg1, %c0_i32, %c0_i32_0 : i32, i32, i32
  }
  func.func @transform_12(%arg0: i32, %arg1: i32) -> (i32, i32, i32) {
    %c0_i32 = arith.constant 0 : i32
    %c0_i32_0 = arith.constant 0 : i32
    %c0_i32_1 = arith.constant 0 : i32
    return %arg1, %c0_i32, %c0_i32_0 : i32, i32, i32
  }
  func.func @transform_13(%arg0: i32, %arg1: i32) -> (i32, i32, i32) {
    %c0_i32 = arith.constant 0 : i32
    %c0_i32_0 = arith.constant 0 : i32
    %c0_i32_1 = arith.constant 0 : i32
    return %arg0, %c0_i32, %c0_i32_0 : i32, i32, i32
  }
}

</mosaic_0001>

<llo_original>
// kernel: clip_text_forward.3
$region0: #{clip_text_forward.3}
  #allocation0 [shape = 'u32[]', space=smem, size = 0x4, offset = 0x4, fixed_abs, tag = 'smem constant byte address 0x4 - core index']
  #allocation1 [shape = 'u32[144,128]{1,0:T(1,128)}', space=vmem, size = 0x12000, scoped, tag = 'internal scratch']
  %s0 = inlined_call_operand.vmem [shape: f32[2,32], index: 0, kind: input, shape index: {}]
  %s1 = inlined_call_operand.vmem [shape: f32[1,32], index: 1, kind: input, shape index: {}]
  %s2 = inlined_call_operand.vmem [shape: f32[1,32], index: 2, kind: input, shape index: {}]
  %s3 = inlined_call_operand.vmem [shape: bf16[32,16], index: 3, kind: input, shape index: {}]
  %s4 = inlined_call_operand.vmem [shape: f32[1,16], index: 4, kind: input, shape index: {}]
  %s5 = inlined_call_operand.hbm [shape: f32[2,16], index: 5, kind: output, shape index: {}]
  %s6 = sld [smem:[#allocation0]]
  $region30: #{clip_text_forward.3} parent=0
    _
  %s8 = ssub.s32 1, %s6
  %s9 = scalar_select 0, %s8, %s6
  $region1: #{clip_text_forward.3} parent=0
    #allocation2 [shape = 'u8[1024]{0}', space=vmem, size = 0x400, scoped, tag = 'output window, operand 0, single buffered']
    #allocation3 [shape = 's32[1]{0}', space=sflag, size = 0x4, scoped, tag = 'scoped memory for clip_text_forward.3']
    %10 = vsyncpa [#allocation3], 0
    // Predicated region
    $region2: #{clip_text_forward.3} parent=1 // pred_check
      _
    $region3: #{clip_text_forward.3} parent=1 // pred_check_branch
      %12 = sbr.rel (0) target = $region5
    $region4: #{clip_text_forward.3} parent=1 // pred_region
      _
    $region5: #{clip_text_forward.3} parent=1 // pred_fallthru
      _
    // Predicated region
    $region6: #{clip_text_forward.3} parent=1 // pred_check
      _
    $region7: #{clip_text_forward.3} parent=1 // pred_check_branch
      %14 = sbr.rel (0) target = $region9
    $region8: #{clip_text_forward.3} parent=1 // pred_region
      _
    $region9: #{clip_text_forward.3} parent=1 // pred_fallthru
      _
    // Predicated region
    $region10: #{clip_text_forward.3} parent=1 // pred_check
      _
    $region11: #{clip_text_forward.3} parent=1 // pred_check_branch
      %16 = sbr.rel (0) target = $region13
    $region12: #{clip_text_forward.3} parent=1 // pred_region
      _
    $region13: #{clip_text_forward.3} parent=1 // pred_fallthru
      _
    // Predicated region
    $region14: #{clip_text_forward.3} parent=1 // pred_check
      _
    $region15: #{clip_text_forward.3} parent=1 // pred_check_branch
      %18 = sbr.rel (0) target = $region17
    $region16: #{clip_text_forward.3} parent=1 // pred_region
      _
    $region17: #{clip_text_forward.3} parent=1 // pred_fallthru
      _
    // Predicated region
    $region18: #{clip_text_forward.3} parent=1 // pred_check
      _
    $region19: #{clip_text_forward.3} parent=1 // pred_check_branch
      %20 = sbr.rel (0) target = $region21
    $region20: #{clip_text_forward.3} parent=1 // pred_region
      _
    $region21: #{clip_text_forward.3} parent=1 // pred_fallthru
      _
    %v22 = vld [vmem:[%s0] sm:$0x3]
    %v23 = vld [vmem:[%s1] sm:$0x1]
    %v24 = vld [vmem:[%s2] sm:$0x1]
    %vm25 = vcmask 254976
    %v26 = vsel %vm25, %v22, 0.0
    %27 = vadd.xlane.f32.xlu0 %v26
    %v28 = vpop.xlane.xlu0 %27
    %v29 = vrcp.pop 32.0
    %v30 = vmul.f32 %v28, %v29
    %v31 = vsub.f32 %v22, %v30
    %v32 = vmul.f32 %v31, %v31
    %v33 = vsel %vm25, %v32, 0.0
    %34 = vadd.xlane.f32.xlu0 %v33
    %v35 = vpop.xlane.xlu0 %34
    %v36 = vmul.f32 %v35, %v29
    %v37 = vadd.f32 %v36, 1e-05
    %v38 = vrsqrt.pop %v37
    %v39 = vmul.f32 %v31, %v38
    %v41 = vlaneseq
    %v42 = vshrl.u32 %v41, 7
    %v43 = vsub.s32 0, %v42
    %v44 = vrot.slane %v23, %v43
    %v46 = vmul.f32 %v39, %v44
    %v48 = vlaneseq
    %v49 = vshrl.u32 %v48, 7
    %v50 = vsub.s32 0, %v49
    %v51 = vrot.slane %v24, %v50
    %v53 = vadd.f32 %v46, %v51
    %v54 = vpack.c.bf16 %v53, %v53
    %v55 = vld [vmem:[%s3] sm:$0xf]
    %v56 = vld [vmem:[%s3 + $0x4] sm:$0xf]
    %v57 = vld [vmem:[%s3 + $0x8] sm:$0xf]
    %v58 = vld [vmem:[%s3 + $0xc] sm:$0xf]
    %v59 = vld [vmem:[%s4] sm:$0x1]
    %v61 = vlaneseq
    %v62 = vshrl.u32 %v61, 7
    %v63 = vsub.s32 0, %v62
    %v64 = vrot.slane %v59, %v63
    %v70 = vunpack.c.l.b16 %v55
    %v71 = vunpack.c.l.b16 %v56
    %v72 = vunpack.c.l.b16 %v57
    %v73 = vunpack.c.l.b16 %v58
    %v74 = vpack.c.b16 %v71, %v70
    %v75 = vpack.c.b16 %v73, %v72
    %vm78 = vcmask 261120
    %v80 = vsel %vm78, %v54, 0
    %82 = vmatprep.subr.bf16.mxu0 0
    %83 = vmatpush1.bf16.msra.mxu0 0
    %84 = vmatprep.subr.bf16.mxu0 0
    %85 = vmatpush1.bf16.msra.mxu0 0
    %86 = vmatprep.subr.bf16.mxu0 0
    %87 = vmatpush1.bf16.msra.mxu0 0
    %88 = vmatprep.subr.bf16.mxu0 0
    %89 = vmatpush1.bf16.msra.mxu0 0
    %90 = vmatprep.subr.bf16.mxu0 0
    %91 = vmatpush1.bf16.msra.mxu0 0
    %92 = vmatprep.subr.bf16.mxu0 0
    %93 = vmatpush1.bf16.msra.mxu0 0
    %94 = vmatprep.subr.bf16.mxu0 0
    %95 = vmatpush1.bf16.msra.mxu0 %v75
    %96 = vmatprep.subr.bf16.mxu0 0
    %97 = vmatpush1.bf16.msra.mxu0 %v74
    %98 = vmatprep.subr.bf16.mxu0 0
    %99 = vmatpush2.bf16.msra.mxu0 0
    %100 = vmatprep.subr.bf16.mxu0 0
    %101 = vmatpush2.bf16.msra.mxu0 0
    %102 = vmatprep.subr.bf16.mxu0 0
    %103 = vmatpush2.bf16.msra.mxu0 0
    %104 = vmatprep.subr.bf16.mxu0 0
    %105 = vmatpush2.bf16.msra.mxu0 0
    %106 = vmatprep.subr.bf16.mxu0 0
    %107 = vmatpush2.bf16.msra.mxu0 0
    %108 = vmatprep.subr.bf16.mxu0 0
    %109 = vmatpush2.bf16.msra.mxu0 0
    %110 = vmatprep.subr.bf16.mxu0 0
    %111 = vmatpush2.bf16.msra.mxu0 0
    %112 = vmatprep.subr.bf16.mxu0 0
    %113 = vmatpush2.bf16.msra.mxu0 0
    %114 = vmatprep.mubr.bf16.mxu0 0
    %115 = vmatmul.mubr.bf16.gmra.mxu0 %v80
    %v116 = vpop.f32.mrf.mxu0
    %v117 = vadd.f32 %v64, %v116
    %v118 = vpop.f32.mrf.mxu0
    %v119 = vpop.f32.mrf.mxu0
    %v120 = vpop.f32.mrf.mxu0
    %121 = vdwg.mxu0
    %vm122 = vcmask 123904
    %123 = vst.msk [vmem:[#allocation2] sm:$0x3] %vm122, %v117
    // Predicated region
    $region22: #{clip_text_forward.3} parent=1 // pred_check
      _
    $region23: #{clip_text_forward.3} parent=1 // pred_check_branch
      %125 = sbr.rel (0) target = $region25
    $region24: #{clip_text_forward.3} parent=1 // pred_region
      %s127 = ssub.s32 32, 32
      %128 = vsyncadd [#allocation3], %s127
      %s130 = sshll.u32 [#allocation2], 4
      %s131 = int_to_ptr.vmem [resolvable:$true] %s130
      %133 = dma.vmem_to_hbm [thread:$0]  %s131, 32, %s5, [#allocation3]
    $region25: #{clip_text_forward.3} parent=1 // pred_fallthru
      _
    // Predicated region
    $region26: #{clip_text_forward.3} parent=1 // pred_check
      _
    $region27: #{clip_text_forward.3} parent=1 // pred_check_branch
      %135 = sbr.rel (0) target = $region29
    $region28: #{clip_text_forward.3} parent=1 // pred_region
      %136 = dma.done [#allocation3], 32
    $region29: #{clip_text_forward.3} parent=1 // pred_fallthru
      _
    %137 = vsyncpa [#allocation3], 1

// kernel: clip_text_forward.2
$region0: #{clip_text_forward.2}
  #allocation0 [shape = 'u32[]', space=smem, size = 0x4, offset = 0x4, fixed_abs, tag = 'smem constant byte address 0x4 - core index']
  #allocation1 [shape = 'u32[144,128]{1,0:T(1,128)}', space=vmem, size = 0x12000, scoped, tag = 'internal scratch']
  %s0 = inlined_call_operand.vmem [shape: f32[2,8,32], index: 0, kind: input, shape index: {}, may-alias: {0,13}]
  %s1 = inlined_call_operand.vmem [shape: f32[2,1,32], index: 1, kind: input, shape index: {}]
  %s2 = inlined_call_operand.vmem [shape: f32[2,1,32], index: 2, kind: input, shape index: {}]
  %s3 = inlined_call_operand.vmem [shape: bf16[2,32,96], index: 3, kind: input, shape index: {}]
  %s4 = inlined_call_operand.vmem [shape: f32[2,1,96], index: 4, kind: input, shape index: {}]
  %s5 = inlined_call_operand.vmem [shape: bf16[2,32,32], index: 5, kind: input, shape index: {}]
  %s6 = inlined_call_operand.vmem [shape: f32[2,1,32], index: 6, kind: input, shape index: {}]
  %s7 = inlined_call_operand.vmem [shape: f32[2,1,32], index: 7, kind: input, shape index: {}]
  %s8 = inlined_call_operand.vmem [shape: f32[2,1,32], index: 8, kind: input, shape index: {}]
  %s9 = inlined_call_operand.vmem [shape: bf16[2,32,128], index: 9, kind: input, shape index: {}]
  %s10 = inlined_call_operand.vmem [shape: f32[2,1,128], index: 10, kind: input, shape index: {}]
  %s11 = inlined_call_operand.vmem [shape: bf16[2,128,32], index: 11, kind: input, shape index: {}]
  %s12 = inlined_call_operand.vmem [shape: f32[2,1,32], index: 12, kind: input, shape index: {}]
  %s13 = inlined_call_operand.vmem [shape: f32[2,8,32], index: 13, kind: output, shape index: {}, may-alias: {0,13}]
  %s14 = sld [smem:[#allocation0]]
  $region89: #{clip_text_forward.2} parent=0
    _
  %s16 = ssub.s32 1, %s14
  %s17 = scalar_select 0, %s16, %s14
  loop: start=0, step=1, limit=4
  $region2: #{clip_text_forward.2} parent=0 // loop_pre_header
    _
  $region3: #{clip_text_forward.2} parent=0 // loop_header
    %s19 = sphi 0, %s23
    %p20 = scmp.ge.s32.totalorder %s19, 4
    %s26 = sphi 0, %s38
    %s27 = sphi 0, %s34
    %s28 = sphi 0, %s26
    %s29 = sphi 0, %s27
    %s30 = sphi 0, %s28
    %s31 = sphi 0, %s29
    %s41 = sphi 0, %s43
    %s44 = sphi 0, %s41
    %s45 = sphi 0, %s44
    %s61 = sphi 0, %s45
    %s67 = sphi 0, %s69
    %s70 = sphi 0, %s67
    %s71 = sphi 0, %s70
    %s87 = sphi 0, %s71
    %s93 = sphi 0, %s95
    %s96 = sphi 0, %s93
    %s97 = sphi 0, %s96
    %s113 = sphi 0, %s97
    %s119 = sphi 0, %s121
    %s122 = sphi 0, %s119
    %s123 = sphi 0, %s122
    %s139 = sphi 0, %s123
    %s145 = sphi 0, %s147
    %s148 = sphi 0, %s145
    %s149 = sphi 0, %s148
    %s165 = sphi 0, %s149
    %s171 = sphi 0, %s173
    %s174 = sphi 0, %s171
    %s175 = sphi 0, %s174
    %s191 = sphi 0, %s175
    %s197 = sphi 0, %s199
    %s200 = sphi 0, %s197
    %s201 = sphi 0, %s200
    %s217 = sphi 0, %s201
    %s223 = sphi 0, %s225
    %s226 = sphi 0, %s223
    %s227 = sphi 0, %s226
    %s243 = sphi 0, %s227
    %s249 = sphi 0, %s251
    %s252 = sphi 0, %s249
    %s253 = sphi 0, %s252
    %s269 = sphi 0, %s253
    %s275 = sphi 0, %s277
    %s278 = sphi 0, %s275
    %s279 = sphi 0, %s278
    %s295 = sphi 0, %s279
    %s301 = sphi 0, %s303
    %s304 = sphi 0, %s301
    %s305 = sphi 0, %s304
    %s321 = sphi 0, %s305
    %s327 = sphi 0, %s329
    %s330 = sphi 0, %s327
    %s331 = sphi 0, %s330
    %s347 = sphi 0, %s331
    %s353 = sphi 0, %s355
    %s356 = sphi 0, %s353
    %s357 = sphi 0, %s356
    %s373 = sphi 0, %s357
    %s379 = sphi 0, %s381
    %s382 = sphi 0, %s379
    %s383 = sphi 0, %s382
    %s399 = sphi 0, %s383
  $region4: #{clip_text_forward.2} parent=0 // loop_header_branch
    %22 = sbr.rel (%p20) target = $region8
  $region5: #{clip_text_forward.2} parent=0 // loop_body
    %s24 = ssub.s32 %s19, 1
    %s25 = ssub.s32 %s19, 2
    %s32 = sadd.s32 1, %s27
    %p33 = scmp.ge.s32.totalorder %s32, 2
    %s34 = scalar_select %p33, 0, %s32
    %s35 = sadd.s32 1, %s26
    %s36 = scalar_select %p33, %s35, %s26
    %p37 = scmp.ge.s32.totalorder %s36, 1
    %s38 = scalar_select %p37, 0, %s36
    %s39 = ssub.s32 %s26, %s38
    %p40 = scmp.eq.s32.totalorder %s39, 0
    %s42 = sadd.s32 %s41, 1
    %s43 = scalar_select %p40, %s41, %s42
    %p46 = pneg %p40
    %p47 = scmp.eq.s32.totalorder %s19, 1
    %p48 = por %p46, %p47
    %p49 = scmp.ne.s32.totalorder %s41, %s44
    %p50 = scmp.eq.s32.totalorder %s19, 0
    %p51 = por %p49, %p50
    %p52 = scmp.ne.s32.totalorder %s41, %s44
    %p53 = scmp.eq.s32.totalorder %s24, 1
    %p54 = por %p52, %p53
    %p55 = scmp.ne.s32.totalorder %s44, %s45
    %p56 = scmp.eq.s32.totalorder %s24, 0
    %p57 = por %p55, %p56
    %p58 = scmp.ne.s32.totalorder %s44, %s45
    %p59 = scmp.eq.s32.totalorder %s25, 1
    %p60 = por %p58, %p59
    %p62 = scmp.ne.s32.totalorder %s45, %s61
    %p63 = scmp.eq.s32.totalorder %s25, 0
    %p64 = por %p62, %p63
    %s65 = ssub.s32 %s27, %s34
    %p66 = scmp.eq.s32.totalorder %s65, 0
    %s68 = sadd.s32 %s67, 1
    %s69 = scalar_select %p66, %s67, %s68
    %p72 = pneg %p66
    %p73 = scmp.eq.s32.totalorder %s19, 1
    %p74 = por %p72, %p73
    %p75 = scmp.ne.s32.totalorder %s67, %s70
    %p76 = scmp.eq.s32.totalorder %s19, 0
    %p77 = por %p75, %p76
    %p78 = scmp.ne.s32.totalorder %s67, %s70
    %p79 = scmp.eq.s32.totalorder %s24, 1
    %p80 = por %p78, %p79
    %p81 = scmp.ne.s32.totalorder %s70, %s71
    %p82 = scmp.eq.s32.totalorder %s24, 0
    %p83 = por %p81, %p82
    %p84 = scmp.ne.s32.totalorder %s70, %s71
    %p85 = scmp.eq.s32.totalorder %s25, 1
    %p86 = por %p84, %p85
    %p88 = scmp.ne.s32.totalorder %s71, %s87
    %p89 = scmp.eq.s32.totalorder %s25, 0
    %p90 = por %p88, %p89
    %s91 = ssub.s32 %s27, %s34
    %p92 = scmp.eq.s32.totalorder %s91, 0
    %s94 = sadd.s32 %s93, 1
    %s95 = scalar_select %p92, %s93, %s94
    %p98 = pneg %p92
    %p99 = scmp.eq.s32.totalorder %s19, 1
    %p100 = por %p98, %p99
    %p101 = scmp.ne.s32.totalorder %s93, %s96
    %p102 = scmp.eq.s32.totalorder %s19, 0
    %p103 = por %p101, %p102
    %p104 = scmp.ne.s32.totalorder %s93, %s96
    %p105 = scmp.eq.s32.totalorder %s24, 1
    %p106 = por %p104, %p105
    %p107 = scmp.ne.s32.totalorder %s96, %s97
    %p108 = scmp.eq.s32.totalorder %s24, 0
    %p109 = por %p107, %p108
    %p110 = scmp.ne.s32.totalorder %s96, %s97
    %p111 = scmp.eq.s32.totalorder %s25, 1
    %p112 = por %p110, %p111
    %p114 = scmp.ne.s32.totalorder %s97, %s113
    %p115 = scmp.eq.s32.totalorder %s25, 0
    %p116 = por %p114, %p115
    %s117 = ssub.s32 %s27, %s34
    %p118 = scmp.eq.s32.totalorder %s117, 0
    %s120 = sadd.s32 %s119, 1
    %s121 = scalar_select %p118, %s119, %s120
    %p124 = pneg %p118
    %p125 = scmp.eq.s32.totalorder %s19, 1
    %p126 = por %p124, %p125
    %p127 = scmp.ne.s32.totalorder %s119, %s122
    %p128 = scmp.eq.s32.totalorder %s19, 0
    %p129 = por %p127, %p128
    %p130 = scmp.ne.s32.totalorder %s119, %s122
    %p131 = scmp.eq.s32.totalorder %s24, 1
    %p132 = por %p130, %p131
    %p133 = scmp.ne.s32.totalorder %s122, %s123
    %p134 = scmp.eq.s32.totalorder %s24, 0
    %p135 = por %p133, %p134
    %p136 = scmp.ne.s32.totalorder %s122, %s123
    %p137 = scmp.eq.s32.totalorder %s25, 1
    %p138 = por %p136, %p137
    %p140 = scmp.ne.s32.totalorder %s123, %s139
    %p141 = scmp.eq.s32.totalorder %s25, 0
    %p142 = por %p140, %p141
    %s143 = ssub.s32 %s27, %s34
    %p144 = scmp.eq.s32.totalorder %s143, 0
    %s146 = sadd.s32 %s145, 1
    %s147 = scalar_select %p144, %s145, %s146
    %p150 = pneg %p144
    %p151 = scmp.eq.s32.totalorder %s19, 1
    %p152 = por %p150, %p151
    %p153 = scmp.ne.s32.totalorder %s145, %s148
    %p154 = scmp.eq.s32.totalorder %s19, 0
    %p155 = por %p153, %p154
    %p156 = scmp.ne.s32.totalorder %s145, %s148
    %p157 = scmp.eq.s32.totalorder %s24, 1
    %p158 = por %p156, %p157
    %p159 = scmp.ne.s32.totalorder %s148, %s149
    %p160 = scmp.eq.s32.totalorder %s24, 0
    %p161 = por %p159, %p160
    %p162 = scmp.ne.s32.totalorder %s148, %s149
    %p163 = scmp.eq.s32.totalorder %s25, 1
    %p164 = por %p162, %p163
    %p166 = scmp.ne.s32.totalorder %s149, %s165
    %p167 = scmp.eq.s32.totalorder %s25, 0
    %p168 = por %p166, %p167
    %s169 = ssub.s32 %s27, %s34
    %p170 = scmp.eq.s32.totalorder %s169, 0
    %s172 = sadd.s32 %s171, 1
    %s173 = scalar_select %p170, %s171, %s172
    %p176 = pneg %p170
    %p177 = scmp.eq.s32.totalorder %s19, 1
    %p178 = por %p176, %p177
    %p179 = scmp.ne.s32.totalorder %s171, %s174
    %p180 = scmp.eq.s32.totalorder %s19, 0
    %p181 = por %p179, %p180
    %p182 = scmp.ne.s32.totalorder %s171, %s174
    %p183 = scmp.eq.s32.totalorder %s24, 1
    %p184 = por %p182, %p183
    %p185 = scmp.ne.s32.totalorder %s174, %s175
    %p186 = scmp.eq.s32.totalorder %s24, 0
    %p187 = por %p185, %p186
    %p188 = scmp.ne.s32.totalorder %s174, %s175
    %p189 = scmp.eq.s32.totalorder %s25, 1
    %p190 = por %p188, %p189
    %p192 = scmp.ne.s32.totalorder %s175, %s191
    %p193 = scmp.eq.s32.totalorder %s25, 0
    %p194 = por %p192, %p193
    %s195 = ssub.s32 %s27, %s34
    %p196 = scmp.eq.s32.totalorder %s195, 0
    %s198 = sadd.s32 %s197, 1
    %s199 = scalar_select %p196, %s197, %s198
    %p202 = pneg %p196
    %p203 = scmp.eq.s32.totalorder %s19, 1
    %p204 = por %p202, %p203
    %p205 = scmp.ne.s32.totalorder %s197, %s200
    %p206 = scmp.eq.s32.totalorder %s19, 0
    %p207 = por %p205, %p206
    %p208 = scmp.ne.s32.totalorder %s197, %s200
    %p209 = scmp.eq.s32.totalorder %s24, 1
    %p210 = por %p208, %p209
    %p211 = scmp.ne.s32.totalorder %s200, %s201
    %p212 = scmp.eq.s32.totalorder %s24, 0
    %p213 = por %p211, %p212
    %p214 = scmp.ne.s32.totalorder %s200, %s201
    %p215 = scmp.eq.s32.totalorder %s25, 1
    %p216 = por %p214, %p215
    %p218 = scmp.ne.s32.totalorder %s201, %s217
    %p219 = scmp.eq.s32.totalorder %s25, 0
    %p220 = por %p218, %p219
    %s221 = ssub.s32 %s27, %s34
    %p222 = scmp.eq.s32.totalorder %s221, 0
    %s224 = sadd.s32 %s223, 1
    %s225 = scalar_select %p222, %s223, %s224
    %p228 = pneg %p222
    %p229 = scmp.eq.s32.totalorder %s19, 1
    %p230 = por %p228, %p229
    %p231 = scmp.ne.s32.totalorder %s223, %s226
    %p232 = scmp.eq.s32.totalorder %s19, 0
    %p233 = por %p231, %p232
    %p234 = scmp.ne.s32.totalorder %s223, %s226
    %p235 = scmp.eq.s32.totalorder %s24, 1
    %p236 = por %p234, %p235
    %p237 = scmp.ne.s32.totalorder %s226, %s227
    %p238 = scmp.eq.s32.totalorder %s24, 0
    %p239 = por %p237, %p238
    %p240 = scmp.ne.s32.totalorder %s226, %s227
    %p241 = scmp.eq.s32.totalorder %s25, 1
    %p242 = por %p240, %p241
    %p244 = scmp.ne.s32.totalorder %s227, %s243
    %p245 = scmp.eq.s32.totalorder %s25, 0
    %p246 = por %p244, %p245
    %s247 = ssub.s32 %s27, %s34
    %p248 = scmp.eq.s32.totalorder %s247, 0
    %s250 = sadd.s32 %s249, 1
    %s251 = scalar_select %p248, %s249, %s250
    %p254 = pneg %p248
    %p255 = scmp.eq.s32.totalorder %s19, 1
    %p256 = por %p254, %p255
    %p257 = scmp.ne.s32.totalorder %s249, %s252
    %p258 = scmp.eq.s32.totalorder %s19, 0
    %p259 = por %p257, %p258
    %p260 = scmp.ne.s32.totalorder %s249, %s252
    %p261 = scmp.eq.s32.totalorder %s24, 1
    %p262 = por %p260, %p261
    %p263 = scmp.ne.s32.totalorder %s252, %s253
    %p264 = scmp.eq.s32.totalorder %s24, 0
    %p265 = por %p263, %p264
    %p266 = scmp.ne.s32.totalorder %s252, %s253
    %p267 = scmp.eq.s32.totalorder %s25, 1
    %p268 = por %p266, %p267
    %p270 = scmp.ne.s32.totalorder %s253, %s269
    %p271 = scmp.eq.s32.totalorder %s25, 0
    %p272 = por %p270, %p271
    %s273 = ssub.s32 %s27, %s34
    %p274 = scmp.eq.s32.totalorder %s273, 0
    %s276 = sadd.s32 %s275, 1
    %s277 = scalar_select %p274, %s275, %s276
    %p280 = pneg %p274
    %p281 = scmp.eq.s32.totalorder %s19, 1
    %p282 = por %p280, %p281
    %p283 = scmp.ne.s32.totalorder %s275, %s278
    %p284 = scmp.eq.s32.totalorder %s19, 0
    %p285 = por %p283, %p284
    %p286 = scmp.ne.s32.totalorder %s275, %s278
    %p287 = scmp.eq.s32.totalorder %s24, 1
    %p288 = por %p286, %p287
    %p289 = scmp.ne.s32.totalorder %s278, %s279
    %p290 = scmp.eq.s32.totalorder %s24, 0
    %p291 = por %p289, %p290
    %p292 = scmp.ne.s32.totalorder %s278, %s279
    %p293 = scmp.eq.s32.totalorder %s25, 1
    %p294 = por %p292, %p293
    %p296 = scmp.ne.s32.totalorder %s279, %s295
    %p297 = scmp.eq.s32.totalorder %s25, 0
    %p298 = por %p296, %p297
    %s299 = ssub.s32 %s27, %s34
    %p300 = scmp.eq.s32.totalorder %s299, 0
    %s302 = sadd.s32 %s301, 1
    %s303 = scalar_select %p300, %s301, %s302
    %p306 = pneg %p300
    %p307 = scmp.eq.s32.totalorder %s19, 1
    %p308 = por %p306, %p307
    %p309 = scmp.ne.s32.totalorder %s301, %s304
    %p310 = scmp.eq.s32.totalorder %s19, 0
    %p311 = por %p309, %p310
    %p312 = scmp.ne.s32.totalorder %s301, %s304
    %p313 = scmp.eq.s32.totalorder %s24, 1
    %p314 = por %p312, %p313
    %p315 = scmp.ne.s32.totalorder %s304, %s305
    %p316 = scmp.eq.s32.totalorder %s24, 0
    %p317 = por %p315, %p316
    %p318 = scmp.ne.s32.totalorder %s304, %s305
    %p319 = scmp.eq.s32.totalorder %s25, 1
    %p320 = por %p318, %p319
    %p322 = scmp.ne.s32.totalorder %s305, %s321
    %p323 = scmp.eq.s32.totalorder %s25, 0
    %p324 = por %p322, %p323
    %s325 = ssub.s32 %s27, %s34
    %p326 = scmp.eq.s32.totalorder %s325, 0
    %s328 = sadd.s32 %s327, 1
    %s329 = scalar_select %p326, %s327, %s328
    %p332 = pneg %p326
    %p333 = scmp.eq.s32.totalorder %s19, 1
    %p334 = por %p332, %p333
    %p335 = scmp.ne.s32.totalorder %s327, %s330
    %p336 = scmp.eq.s32.totalorder %s19, 0
    %p337 = por %p335, %p336
    %p338 = scmp.ne.s32.totalorder %s327, %s330
    %p339 = scmp.eq.s32.totalorder %s24, 1
    %p340 = por %p338, %p339
    %p341 = scmp.ne.s32.totalorder %s330, %s331
    %p342 = scmp.eq.s32.totalorder %s24, 0
    %p343 = por %p341, %p342
    %p344 = scmp.ne.s32.totalorder %s330, %s331
    %p345 = scmp.eq.s32.totalorder %s25, 1
    %p346 = por %p344, %p345
    %p348 = scmp.ne.s32.totalorder %s331, %s347
    %p349 = scmp.eq.s32.totalorder %s25, 0
    %p350 = por %p348, %p349
    %s351 = ssub.s32 %s27, %s34
    %p352 = scmp.eq.s32.totalorder %s351, 0
    %s354 = sadd.s32 %s353, 1
    %s355 = scalar_select %p352, %s353, %s354
    %p358 = pneg %p352
    %p359 = scmp.eq.s32.totalorder %s19, 1
    %p360 = por %p358, %p359
    %p361 = scmp.ne.s32.totalorder %s353, %s356
    %p362 = scmp.eq.s32.totalorder %s19, 0
    %p363 = por %p361, %p362
    %p364 = scmp.ne.s32.totalorder %s353, %s356
    %p365 = scmp.eq.s32.totalorder %s24, 1
    %p366 = por %p364, %p365
    %p367 = scmp.ne.s32.totalorder %s356, %s357
    %p368 = scmp.eq.s32.totalorder %s24, 0
    %p369 = por %p367, %p368
    %p370 = scmp.ne.s32.totalorder %s356, %s357
    %p371 = scmp.eq.s32.totalorder %s25, 1
    %p372 = por %p370, %p371
    %p374 = scmp.ne.s32.totalorder %s357, %s373
    %p375 = scmp.eq.s32.totalorder %s25, 0
    %p376 = por %p374, %p375
    %s377 = ssub.s32 %s26, %s38
    %p378 = scmp.eq.s32.totalorder %s377, 0
    %s380 = sadd.s32 %s379, 1
    %s381 = scalar_select %p378, %s379, %s380
    %p384 = pneg %p378
    %p385 = scmp.eq.s32.totalorder %s19, 1
    %p386 = por %p384, %p385
    %p387 = scmp.ne.s32.totalorder %s379, %s382
    %p388 = scmp.eq.s32.totalorder %s19, 0
    %p389 = por %p387, %p388
    %p390 = scmp.ne.s32.totalorder %s379, %s382
    %p391 = scmp.eq.s32.totalorder %s24, 1
    %p392 = por %p390, %p391
    %p393 = scmp.ne.s32.totalorder %s382, %s383
    %p394 = scmp.eq.s32.totalorder %s24, 0
    %p395 = por %p393, %p394
    %p396 = scmp.ne.s32.totalorder %s382, %s383
    %p397 = scmp.eq.s32.totalorder %s25, 1
    %p398 = por %p396, %p397
    %p400 = scmp.ne.s32.totalorder %s383, %s399
    %p401 = scmp.eq.s32.totalorder %s25, 0
    %p402 = por %p400, %p401
    %p403 = scmp.le.s32.totalorder 1, %s19
    %p404 = scmp.lt.s32.totalorder %s19, 3
    %p405 = pnand %p403, %p404
    %p406 = pneg %p405
    // Predicated region
    $region9: #{clip_text_forward.2} parent=5 // pred_check
      _
    $region10: #{clip_text_forward.2} parent=5 // pred_check_branch
      %408 = sbr.rel (%p405) target = $region12
    $region11: #{clip_text_forward.2} parent=5 // pred_region
      %s409 = ssub.s32 %s19, 1
      // Predicated region
      $region13: #{clip_text_forward.2} parent=11 // pred_check
        %p410 = pneg %p57
      $region14: #{clip_text_forward.2} parent=11 // pred_check_branch
        %412 = sbr.rel (%p410) target = $region16
      $region15: #{clip_text_forward.2} parent=11 // pred_region
        %s413 = smul.u32 2, %s28
        %p414 = scmp.lt.s32.totalorder %s413, 1
        %s415 = scalar_select %p414, %s413, 1
        %s416 = smul.addr %s415, 8
        %s417 = scalar_lea.vmem %s0, %s416
        %s418 = smul.u32 2, %s28
      $region16: #{clip_text_forward.2} parent=11 // pred_fallthru
        _
    $region12: #{clip_text_forward.2} parent=5 // pred_fallthru
      _
    %p419 = scmp.lt.s32.totalorder %s19, 2
    // Predicated region
    $region17: #{clip_text_forward.2} parent=5 // pred_check
      %p420 = pneg %p419
    $region18: #{clip_text_forward.2} parent=5 // pred_check_branch
      %422 = sbr.rel (%p420) target = $region20
    $region19: #{clip_text_forward.2} parent=5 // pred_region
      // Predicated region
      $region21: #{clip_text_forward.2} parent=19 // pred_check
        %p423 = pneg %p77
      $region22: #{clip_text_forward.2} parent=19 // pred_check_branch
        %425 = sbr.rel (%p423) target = $region24
      $region23: #{clip_text_forward.2} parent=19 // pred_region
        %p426 = scmp.lt.s32.totalorder %s27, 1
        %s427 = scalar_select %p426, %s27, 1
        %s428 = scalar_lea.vmem %s1, %s427
      $region24: #{clip_text_forward.2} parent=19 // pred_fallthru
        _
      // Predicated region
      $region25: #{clip_text_forward.2} parent=19 // pred_check
        %p429 = pneg %p103
      $region26: #{clip_text_forward.2} parent=19 // pred_check_branch
        %431 = sbr.rel (%p429) target = $region28
      $region27: #{clip_text_forward.2} parent=19 // pred_region
        %p432 = scmp.lt.s32.totalorder %s27, 1
        %s433 = scalar_select %p432, %s27, 1
        %s434 = scalar_lea.vmem %s2, %s433
      $region28: #{clip_text_forward.2} parent=19 // pred_fallthru
        _
      // Predicated region
      $region29: #{clip_text_forward.2} parent=19 // pred_check
        %p435 = pneg %p129
      $region30: #{clip_text_forward.2} parent=19 // pred_check_branch
        %437 = sbr.rel (%p435) target = $region32
      $region31: #{clip_text_forward.2} parent=19 // pred_region
        %p438 = scmp.lt.s32.totalorder %s27, 1
        %s439 = scalar_select %p438, %s27, 1
        %s440 = smul.addr %s439, 4
        %s441 = smul.addr %s440, 4
        %s442 = scalar_lea.vmem %s3, %s441
      $region32: #{clip_text_forward.2} parent=19 // pred_fallthru
        _
      // Predicated region
      $region33: #{clip_text_forward.2} parent=19 // pred_check
        %p443 = pneg %p155
      $region34: #{clip_text_forward.2} parent=19 // pred_check_branch
        %445 = sbr.rel (%p443) target = $region36
      $region35: #{clip_text_forward.2} parent=19 // pred_region
        %p446 = scmp.lt.s32.totalorder %s27, 1
        %s447 = scalar_select %p446, %s27, 1
        %s448 = scalar_lea.vmem %s4, %s447
      $region36: #{clip_text_forward.2} parent=19 // pred_fallthru
        _
      // Predicated region
      $region37: #{clip_text_forward.2} parent=19 // pred_check
        %p449 = pneg %p181
      $region38: #{clip_text_forward.2} parent=19 // pred_check_branch
        %451 = sbr.rel (%p449) target = $region40
      $region39: #{clip_text_forward.2} parent=19 // pred_region
        %p452 = scmp.lt.s32.totalorder %s27, 1
        %s453 = scalar_select %p452, %s27, 1
        %s454 = smul.addr %s453, 4
        %s455 = smul.addr %s454, 4
        %s456 = scalar_lea.vmem %s5, %s455
      $region40: #{clip_text_forward.2} parent=19 // pred_fallthru
        _
      // Predicated region
      $region41: #{clip_text_forward.2} parent=19 // pred_check
        %p457 = pneg %p207
      $region42: #{clip_text_forward.2} parent=19 // pred_check_branch
        %459 = sbr.rel (%p457) target = $region44
      $region43: #{clip_text_forward.2} parent=19 // pred_region
        %p460 = scmp.lt.s32.totalorder %s27, 1
        %s461 = scalar_select %p460, %s27, 1
        %s462 = scalar_lea.vmem %s6, %s461
      $region44: #{clip_text_forward.2} parent=19 // pred_fallthru
        _
      // Predicated region
      $region45: #{clip_text_forward.2} parent=19 // pred_check
        %p463 = pneg %p233
      $region46: #{clip_text_forward.2} parent=19 // pred_check_branch
        %465 = sbr.rel (%p463) target = $region48
      $region47: #{clip_text_forward.2} parent=19 // pred_region
        %p466 = scmp.lt.s32.totalorder %s27, 1
        %s467 = scalar_select %p466, %s27, 1
        %s468 = scalar_lea.vmem %s7, %s467
      $region48: #{clip_text_forward.2} parent=19 // pred_fallthru
        _
      // Predicated region
      $region49: #{clip_text_forward.2} parent=19 // pred_check
        %p469 = pneg %p259
      $region50: #{clip_text_forward.2} parent=19 // pred_check_branch
        %471 = sbr.rel (%p469) target = $region52
      $region51: #{clip_text_forward.2} parent=19 // pred_region
        %p472 = scmp.lt.s32.totalorder %s27, 1
        %s473 = scalar_select %p472, %s27, 1
        %s474 = scalar_lea.vmem %s8, %s473
      $region52: #{clip_text_forward.2} parent=19 // pred_fallthru
        _
      // Predicated region
      $region53: #{clip_text_forward.2} parent=19 // pred_check
        %p475 = pneg %p285
      $region54: #{clip_text_forward.2} parent=19 // pred_check_branch
        %477 = sbr.rel (%p475) target = $region56
      $region55: #{clip_text_forward.2} parent=19 // pred_region
        %p478 = scmp.lt.s32.totalorder %s27, 1
        %s479 = scalar_select %p478, %s27, 1
        %s480 = smul.addr %s479, 4
        %s481 = smul.addr %s480, 4
        %s482 = scalar_lea.vmem %s9, %s481
      $region56: #{clip_text_forward.2} parent=19 // pred_fallthru
        _
      // Predicated region
      $region57: #{clip_text_forward.2} parent=19 // pred_check
        %p483 = pneg %p311
      $region58: #{clip_text_forward.2} parent=19 // pred_check_branch
        %485 = sbr.rel (%p483) target = $region60
      $region59: #{clip_text_forward.2} parent=19 // pred_region
        %p486 = scmp.lt.s32.totalorder %s27, 1
        %s487 = scalar_select %p486, %s27, 1
        %s488 = scalar_lea.vmem %s10, %s487
      $region60: #{clip_text_forward.2} parent=19 // pred_fallthru
        _
      // Predicated region
      $region61: #{clip_text_forward.2} parent=19 // pred_check
        %p489 = pneg %p337
      $region62: #{clip_text_forward.2} parent=19 // pred_check_branch
        %491 = sbr.rel (%p489) target = $region64
      $region63: #{clip_text_forward.2} parent=19 // pred_region
        %p492 = scmp.lt.s32.totalorder %s27, 1
        %s493 = scalar_select %p492, %s27, 1
        %s494 = smul.addr %s493, 16
        %s495 = smul.addr %s494, 4
        %s496 = scalar_lea.vmem %s11, %s495
      $region64: #{clip_text_forward.2} parent=19 // pred_fallthru
        _
      // Predicated region
      $region65: #{clip_text_forward.2} parent=19 // pred_check
        %p497 = pneg %p363
      $region66: #{clip_text_forward.2} parent=19 // pred_check_branch
        %499 = sbr.rel (%p497) target = $region68
      $region67: #{clip_text_forward.2} parent=19 // pred_region
        %p500 = scmp.lt.s32.totalorder %s27, 1
        %s501 = scalar_select %p500, %s27, 1
        %s502 = scalar_lea.vmem %s12, %s501
      $region68: #{clip_text_forward.2} parent=19 // pred_fallthru
        _
    $region20: #{clip_text_forward.2} parent=5 // pred_fallthru
      _
    %p503 = scmp.le.s32.totalorder 1, %s19
    %p504 = scmp.lt.s32.totalorder %s19, 3
    %p505 = pnand %p503, %p504
    %p506 = pneg %p505
    // Predicated region
    $region69: #{clip_text_forward.2} parent=5 // pred_check
      _
    $region70: #{clip_text_forward.2} parent=5 // pred_check_branch
      %508 = sbr.rel (%p505) target = $region72
    $region71: #{clip_text_forward.2} parent=5 // pred_region
      %s509 = ssub.s32 %s19, 1
      %s510 = smul.u32 2, %s28
      %p511 = scmp.lt.s32.totalorder %s510, 1
      %s512 = scalar_select %p511, %s510, 1
      %s513 = smul.addr %s512, 8
      %s514 = scalar_lea.vmem %s0, %s513
      %p515 = pneg %p57
      %p516 = pneg %p54
      %p517 = scmp.lt.s32.totalorder %s29, 1
      %s518 = scalar_select %p517, %s29, 1
      %s519 = scalar_lea.vmem %s1, %s518
      %p520 = pneg %p83
      %p521 = pneg %p80
      %p522 = scmp.lt.s32.totalorder %s29, 1
      %s523 = scalar_select %p522, %s29, 1
      %s524 = scalar_lea.vmem %s2, %s523
      %p525 = pneg %p109
      %p526 = pneg %p106
      %p527 = scmp.lt.s32.totalorder %s29, 1
      %s528 = scalar_select %p527, %s29, 1
      %s529 = smul.addr %s528, 4
      %s530 = smul.addr %s529, 4
      %s531 = scalar_lea.vmem %s3, %s530
      %p532 = pneg %p135
      %p533 = pneg %p132
      %p534 = scmp.lt.s32.totalorder %s29, 1
      %s535 = scalar_select %p534, %s29, 1
      %s536 = scalar_lea.vmem %s4, %s535
      %p537 = pneg %p161
      %p538 = pneg %p158
      %p539 = scmp.lt.s32.totalorder %s29, 1
      %s540 = scalar_select %p539, %s29, 1
      %s541 = smul.addr %s540, 4
      %s542 = smul.addr %s541, 4
      %s543 = scalar_lea.vmem %s5, %s542
      %p544 = pneg %p187
      %p545 = pneg %p184
      %p546 = scmp.lt.s32.totalorder %s29, 1
      %s547 = scalar_select %p546, %s29, 1
      %s548 = scalar_lea.vmem %s6, %s547
      %p549 = pneg %p213
      %p550 = pneg %p210
      %p551 = scmp.lt.s32.totalorder %s29, 1
      %s552 = scalar_select %p551, %s29, 1
      %s553 = scalar_lea.vmem %s7, %s552
      %p554 = pneg %p239
      %p555 = pneg %p236
      %p556 = scmp.lt.s32.totalorder %s29, 1
      %s557 = scalar_select %p556, %s29, 1
      %s558 = scalar_lea.vmem %s8, %s557
      %p559 = pneg %p265
      %p560 = pneg %p262
      %p561 = scmp.lt.s32.totalorder %s29, 1
      %s562 = scalar_select %p561, %s29, 1
      %s563 = smul.addr %s562, 4
      %s564 = smul.addr %s563, 4
      %s565 = scalar_lea.vmem %s9, %s564
      %p566 = pneg %p291
      %p567 = pneg %p288
      %p568 = scmp.lt.s32.totalorder %s29, 1
      %s569 = scalar_select %p568, %s29, 1
      %s570 = scalar_lea.vmem %s10, %s569
      %p571 = pneg %p317
      %p572 = pneg %p314
      %p573 = scmp.lt.s32.totalorder %s29, 1
      %s574 = scalar_select %p573, %s29, 1
      %s575 = smul.addr %s574, 16
      %s576 = smul.addr %s575, 4
      %s577 = scalar_lea.vmem %s11, %s576
      %p578 = pneg %p343
      %p579 = pneg %p340
      %p580 = scmp.lt.s32.totalorder %s29, 1
      %s581 = scalar_select %p580, %s29, 1
      %s582 = scalar_lea.vmem %s12, %s581
      %p583 = pneg %p369
      %p584 = pneg %p366
      %p585 = pneg %p395
      %p586 = pneg %p392
      %s587 = smul.u32 2, %s28
      %p588 = scmp.lt.s32.totalorder %s587, 1
      %s589 = scalar_select %p588, %s587, 1
      %s590 = smul.addr %s589, 8
      %s591 = scalar_lea.vmem %s13, %s590
      %s592 = smul.u32 2, %s28
      %p593 = scmp.lt.s32.totalorder %s592, 1
      %s594 = scalar_select %p593, %s592, 1
      %s595 = smul.addr %s594, 8
      %s596 = scalar_lea.vmem %s0, %s595
      %s597 = smul.u32 2, %s28
      %p598 = scmp.lt.s32.totalorder %s29, 1
      %s599 = scalar_select %p598, %s29, 1
      %s600 = scalar_lea.vmem %s1, %s599
      %p601 = scmp.lt.s32.totalorder %s29, 1
      %s602 = scalar_select %p601, %s29, 1
      %s603 = scalar_lea.vmem %s2, %s602
      %p604 = scmp.lt.s32.totalorder %s29, 1
      %s605 = scalar_select %p604, %s29, 1
      %s606 = smul.addr %s605, 4
      %s607 = smul.addr %s606, 4
      %s608 = scalar_lea.vmem %s3, %s607
      %p609 = scmp.lt.s32.totalorder %s29, 1
      %s610 = scalar_select %p609, %s29, 1
      %s611 = scalar_lea.vmem %s4, %s610
      %p612 = scmp.lt.s32.totalorder %s29, 1
      %s613 = scalar_select %p612, %s29, 1
      %s614 = smul.addr %s613, 4
      %s615 = smul.addr %s614, 4
      %s616 = scalar_lea.vmem %s5, %s615
      %p617 = scmp.lt.s32.totalorder %s29, 1
      %s618 = scalar_select %p617, %s29, 1
      %s619 = scalar_lea.vmem %s6, %s618
      %p620 = scmp.lt.s32.totalorder %s29, 1
      %s621 = scalar_select %p620, %s29, 1
      %s622 = scalar_lea.vmem %s7, %s621
      %p623 = scmp.lt.s32.totalorder %s29, 1
      %s624 = scalar_select %p623, %s29, 1
      %s625 = scalar_lea.vmem %s8, %s624
      %p626 = scmp.lt.s32.totalorder %s29, 1
      %s627 = scalar_select %p626, %s29, 1
      %s628 = smul.addr %s627, 4
      %s629 = smul.addr %s628, 4
      %s630 = scalar_lea.vmem %s9, %s629
      %p631 = scmp.lt.s32.totalorder %s29, 1
      %s632 = scalar_select %p631, %s29, 1
      %s633 = scalar_lea.vmem %s10, %s632
      %p634 = scmp.lt.s32.totalorder %s29, 1
      %s635 = scalar_select %p634, %s29, 1
      %s636 = smul.addr %s635, 16
      %s637 = smul.addr %s636, 4
      %s638 = scalar_lea.vmem %s11, %s637
      %p639 = scmp.lt.s32.totalorder %s29, 1
      %s640 = scalar_select %p639, %s29, 1
      %s641 = scalar_lea.vmem %s12, %s640
      %s642 = smul.u32 2, %s28
      %p643 = scmp.lt.s32.totalorder %s642, 1
      %s644 = scalar_select %p643, %s642, 1
      %s645 = smul.addr %s644, 8
      %s646 = scalar_lea.vmem %s13, %s645
      %s647 = smul.u32 2, %s28
      %p651 = scmp.eq.s32.totalorder %s29, 0
      // Predicated region
      $region73: #{clip_text_forward.2} parent=71 // pred_check
        %p652 = pneg %p651
      $region74: #{clip_text_forward.2} parent=71 // pred_check_branch
        %654 = sbr.rel (%p652) target = $region76
      $region75: #{clip_text_forward.2} parent=71 // pred_region
        %v655 = vld [vmem:[%s596] sm:$0xff]
        %v656 = vld [vmem:[%s596 + $0x8] sm:$0xff]
        %vm657 = vcmask 261120
        %658 = vst.msk [vmem:[%s646] sm:$0xff] %vm657, %v655
        %659 = vst.msk [vmem:[%s646 + $0x8] sm:$0xff] %vm657, %v656
      $region76: #{clip_text_forward.2} parent=71 // pred_fallthru
        _
      %v660 = vld [vmem:[%s646] sm:$0xff]
      %v661 = vld [vmem:[%s646 + $0x8] sm:$0xff]
      %v662 = vlaneseq
      %v663 = vshrl.u32 %v662, 7
      %v664 = vlaneseq
      %v665 = vand.u32 %v664, 127
      %vm666 = vcmp.gt.s32.totalorder %v665, %v663
      %v667 = vsel %vm666, -1e+30, 0.0
      %v668 = vld [vmem:[%s600] sm:$0x1]
      %v669 = vld [vmem:[%s603] sm:$0x1]
      %vm670 = vcmask 261120
      %v671 = vsel %vm670, %v660, 0.0
      %672 = vadd.xlane.f32.xlu0 %v671
      %v673 = vpop.xlane.xlu0 %672
      %v674 = vsel %vm670, %v661, 0.0
      %675 = vadd.xlane.f32.xlu0 %v674
      %v676 = vpop.xlane.xlu0 %675
      %v677 = vrcp.pop 32.0
      %v678 = vmul.f32 %v673, %v677
      %v679 = vmul.f32 %v676, %v677
      %v680 = vsub.f32 %v660, %v678
      %v681 = vsub.f32 %v661, %v679
      %v682 = vmul.f32 %v680, %v680
      %v683 = vmul.f32 %v681, %v681
      %v684 = vsel %vm670, %v682, 0.0
      %685 = vadd.xlane.f32.xlu0 %v684
      %v686 = vpop.xlane.xlu0 %685
      %v687 = vsel %vm670, %v683, 0.0
      %688 = vadd.xlane.f32.xlu0 %v687
      %v689 = vpop.xlane.xlu0 %688
      %v690 = vmul.f32 %v686, %v677
      %v691 = vmul.f32 %v689, %v677
      %v692 = vadd.f32 %v690, 1e-05
      %v693 = vadd.f32 %v691, 1e-05
      %v694 = vrsqrt.pop %v692
      %v695 = vrsqrt.pop %v693
      %v696 = vmul.f32 %v680, %v694
      %v697 = vmul.f32 %v681, %v695
      %v699 = vlaneseq
      %v700 = vshrl.u32 %v699, 7
      %v701 = vsub.s32 0, %v700
      %v702 = vrot.slane %v668, %v701
      %v704 = vmul.f32 %v696, %v702
      %v705 = vmul.f32 %v697, %v702
      %v707 = vlaneseq
      %v708 = vshrl.u32 %v707, 7
      %v709 = vsub.s32 0, %v708
      %v710 = vrot.slane %v669, %v709
      %v712 = vadd.f32 %v704, %v710
      %v713 = vadd.f32 %v705, %v710
      %v714 = vpack.c.bf16 %v713, %v712
      %v715 = vld [vmem:[%s608] sm:$0xf]
      %v716 = vld [vmem:[%s608 + $0x4] sm:$0xf]
      %v717 = vld [vmem:[%s608 + $0x8] sm:$0xf]
      %v718 = vld [vmem:[%s608 + $0xc] sm:$0xf]
      %v719 = vld [vmem:[%s611] sm:$0x1]
      %v721 = vlaneseq
      %v722 = vshrl.u32 %v721, 7
      %v723 = vsub.s32 0, %v722
      %v724 = vrot.slane %v719, %v723
      %v730 = vunpack.c.l.b16 %v715
      %v731 = vunpack.c.l.b16 %v716
      %v732 = vunpack.c.l.b16 %v717
      %v733 = vunpack.c.l.b16 %v718
      %v734 = vpack.c.b16 %v731, %v730
      %v735 = vpack.c.b16 %v733, %v732
      %v739 = vsel %vm670, %v714, 0
      %741 = vmatprep.subr.bf16.mxu0 0
      %742 = vmatpush1.bf16.msra.mxu0 0
      %743 = vmatprep.subr.bf16.mxu0 0
      %744 = vmatpush1.bf16.msra.mxu0 0
      %745 = vmatprep.subr.bf16.mxu0 0
      %746 = vmatpush1.bf16.msra.mxu0 0
      %747 = vmatprep.subr.bf16.mxu0 0
      %748 = vmatpush1.bf16.msra.mxu0 0
      %749 = vmatprep.subr.bf16.mxu0 0
      %750 = vmatpush1.bf16.msra.mxu0 0
      %751 = vmatprep.subr.bf16.mxu0 0
      %752 = vmatpush1.bf16.msra.mxu0 0
      %753 = vmatprep.subr.bf16.mxu0 0
      %754 = vmatpush1.bf16.msra.mxu0 %v735
      %755 = vmatprep.subr.bf16.mxu0 0
      %756 = vmatpush1.bf16.msra.mxu0 %v734
      %757 = vmatprep.subr.bf16.mxu0 0
      %758 = vmatpush2.bf16.msra.mxu0 0
      %759 = vmatprep.subr.bf16.mxu0 0
      %760 = vmatpush2.bf16.msra.mxu0 0
      %761 = vmatprep.subr.bf16.mxu0 0
      %762 = vmatpush2.bf16.msra.mxu0 0
      %763 = vmatprep.subr.bf16.mxu0 0
      %764 = vmatpush2.bf16.msra.mxu0 0
      %765 = vmatprep.subr.bf16.mxu0 0
      %766 = vmatpush2.bf16.msra.mxu0 0
      %767 = vmatprep.subr.bf16.mxu0 0
      %768 = vmatpush2.bf16.msra.mxu0 0
      %769 = vmatprep.subr.bf16.mxu0 0
      %770 = vmatpush2.bf16.msra.mxu0 0
      %771 = vmatprep.subr.bf16.mxu0 0
      %772 = vmatpush2.bf16.msra.mxu0 0
      %773 = vmatprep.mubr.bf16.mxu0 0
      %774 = vmatmul.mubr.bf16.gmra.mxu0 %v739
      %v775 = vpop.f32.mrf.mxu0
      %v776 = vadd.f32 %v724, %v775
      %v777 = vpop.f32.mrf.mxu0
      %v778 = vpop.f32.mrf.mxu0
      %v779 = vadd.f32 %v724, %v778
      %v780 = vpop.f32.mrf.mxu0
      %781 = vdwg.mxu0
      %v782 = vpack.c.bf16 %v776, %v776
      %v783 = vpack.c.bf16 %v779, %v779
      %786 = vrot.lane.b32.xlu0 %v782, 120
      %v787 = vpop.permute.xlu0 %786
      %788 = vrot.lane.b32.xlu0 %v783, 120
      %v789 = vpop.permute.xlu0 %788
      %790 = vrot.lane.b32.xlu0 %v782, 112
      %v791 = vpop.permute.xlu0 %790
      %792 = vrot.lane.b32.xlu0 %v783, 112
      %v793 = vpop.permute.xlu0 %792
      %794 = vrot.lane.b32.xlu0 %v782, 104
      %v795 = vpop.permute.xlu0 %794
      %796 = vrot.lane.b32.xlu0 %v783, 104
      %v797 = vpop.permute.xlu0 %796
      %798 = vrot.lane.b32.xlu0 %v782, 96
      %v799 = vpop.permute.xlu0 %798
      %vm800 = vcmask 64512
      %v802 = vsel %vm800, %v782, 0
      %v805 = vsel %vm800, %v799, 0
      %807 = vmatprep.subr.bf16.mxu0 0
      %808 = vmatpush1.bf16.xpose.msra.mxu0 0
      %809 = vmatprep.subr.bf16.mxu0 0
      %810 = vmatpush1.bf16.xpose.msra.mxu0 0
      %811 = vmatprep.subr.bf16.mxu0 0
      %812 = vmatpush1.bf16.xpose.msra.mxu0 0
      %813 = vmatprep.subr.bf16.mxu0 0
      %814 = vmatpush1.bf16.xpose.msra.mxu0 0
      %815 = vmatprep.subr.bf16.mxu0 0
      %816 = vmatpush1.bf16.xpose.msra.mxu0 0
      %817 = vmatprep.subr.bf16.mxu0 0
      %818 = vmatpush1.bf16.xpose.msra.mxu0 0
      %819 = vmatprep.subr.bf16.mxu0 0
      %820 = vmatpush1.bf16.xpose.msra.mxu0 0
      %821 = vmatprep.subr.bf16.mxu0 0
      %822 = vmatpush1.bf16.xpose.msra.mxu0 %v805
      %823 = vmatprep.subr.bf16.mxu0 0
      %824 = vmatpush2.bf16.xpose.msra.mxu0 0
      %825 = vmatprep.subr.bf16.mxu0 0
      %826 = vmatpush2.bf16.xpose.msra.mxu0 0
      %827 = vmatprep.subr.bf16.mxu0 0
      %828 = vmatpush2.bf16.xpose.msra.mxu0 0
      %829 = vmatprep.subr.bf16.mxu0 0
      %830 = vmatpush2.bf16.xpose.msra.mxu0 0
      %831 = vmatprep.subr.bf16.mxu0 0
      %832 = vmatpush2.bf16.xpose.msra.mxu0 0
      %833 = vmatprep.subr.bf16.mxu0 0
      %834 = vmatpush2.bf16.xpose.msra.mxu0 0
      %835 = vmatprep.subr.bf16.mxu0 0
      %836 = vmatpush2.bf16.xpose.msra.mxu0 0
      %837 = vmatprep.subr.bf16.mxu0 0
      %838 = vmatpush2.bf16.xpose.msra.mxu0 0
      %839 = vmatprep.mubr.bf16.mxu0 0
      %840 = vmatmul.mubr.bf16.gmra.mxu0 %v802
      %v841 = vpop.f32.mrf.mxu0
      %v842 = vadd.f32 %v667, %v841
      %v843 = vpop.f32.mrf.mxu0
      %v844 = vpop.f32.mrf.mxu0
      %v845 = vpop.f32.mrf.mxu0
      %846 = vdwg.mxu0
      %847 = vrot.lane.b32.xlu0 %v783, 96
      %v848 = vpop.permute.xlu0 %847
      %v850 = vsel %vm800, %v783, 0
      %v853 = vsel %vm800, %v848, 0
      %855 = vmatprep.subr.bf16.mxu0 0
      %856 = vmatpush1.bf16.xpose.msra.mxu0 0
      %857 = vmatprep.subr.bf16.mxu0 0
      %858 = vmatpush1.bf16.xpose.msra.mxu0 0
      %859 = vmatprep.subr.bf16.mxu0 0
      %860 = vmatpush1.bf16.xpose.msra.mxu0 0
      %861 = vmatprep.subr.bf16.mxu0 0
      %862 = vmatpush1.bf16.xpose.msra.mxu0 0
      %863 = vmatprep.subr.bf16.mxu0 0
      %864 = vmatpush1.bf16.xpose.msra.mxu0 0
      %865 = vmatprep.subr.bf16.mxu0 0
      %866 = vmatpush1.bf16.xpose.msra.mxu0 0
      %867 = vmatprep.subr.bf16.mxu0 0
      %868 = vmatpush1.bf16.xpose.msra.mxu0 0
      %869 = vmatprep.subr.bf16.mxu0 0
      %870 = vmatpush1.bf16.xpose.msra.mxu0 %v853
      %871 = vmatprep.subr.bf16.mxu0 0
      %872 = vmatpush2.bf16.xpose.msra.mxu0 0
      %873 = vmatprep.subr.bf16.mxu0 0
      %874 = vmatpush2.bf16.xpose.msra.mxu0 0
      %875 = vmatprep.subr.bf16.mxu0 0
      %876 = vmatpush2.bf16.xpose.msra.mxu0 0
      %877 = vmatprep.subr.bf16.mxu0 0
      %878 = vmatpush2.bf16.xpose.msra.mxu0 0
      %879 = vmatprep.subr.bf16.mxu0 0
      %880 = vmatpush2.bf16.xpose.msra.mxu0 0
      %881 = vmatprep.subr.bf16.mxu0 0
      %882 = vmatpush2.bf16.xpose.msra.mxu0 0
      %883 = vmatprep.subr.bf16.mxu0 0
      %884 = vmatpush2.bf16.xpose.msra.mxu0 0
      %885 = vmatprep.subr.bf16.mxu0 0
      %886 = vmatpush2.bf16.xpose.msra.mxu0 0
      %887 = vmatprep.mubr.bf16.mxu0 0
      %888 = vmatmul.mubr.bf16.gmra.mxu0 %v850
      %v889 = vpop.f32.mrf.mxu0
      %v890 = vadd.f32 %v667, %v889
      %v891 = vpop.f32.mrf.mxu0
      %v892 = vpop.f32.mrf.mxu0
      %v893 = vpop.f32.mrf.mxu0
      %894 = vdwg.mxu0
      %895 = vrot.lane.b32.xlu0 %v787, 96
      %v896 = vpop.permute.xlu0 %895
      %v898 = vsel %vm800, %v787, 0
      %v901 = vsel %vm800, %v896, 0
      %903 = vmatprep.subr.bf16.mxu0 0
      %904 = vmatpush1.bf16.xpose.msra.mxu0 0
      %905 = vmatprep.subr.bf16.mxu0 0
      %906 = vmatpush1.bf16.xpose.msra.mxu0 0
      %907 = vmatprep.subr.bf16.mxu0 0
      %908 = vmatpush1.bf16.xpose.msra.mxu0 0
      %909 = vmatprep.subr.bf16.mxu0 0
      %910 = vmatpush1.bf16.xpose.msra.mxu0 0
      %911 = vmatprep.subr.bf16.mxu0 0
      %912 = vmatpush1.bf16.xpose.msra.mxu0 0
      %913 = vmatprep.subr.bf16.mxu0 0
      %914 = vmatpush1.bf16.xpose.msra.mxu0 0
      %915 = vmatprep.subr.bf16.mxu0 0
      %916 = vmatpush1.bf16.xpose.msra.mxu0 0
      %917 = vmatprep.subr.bf16.mxu0 0
      %918 = vmatpush1.bf16.xpose.msra.mxu0 %v901
      %919 = vmatprep.subr.bf16.mxu0 0
      %920 = vmatpush2.bf16.xpose.msra.mxu0 0
      %921 = vmatprep.subr.bf16.mxu0 0
      %922 = vmatpush2.bf16.xpose.msra.mxu0 0
      %923 = vmatprep.subr.bf16.mxu0 0
      %924 = vmatpush2.bf16.xpose.msra.mxu0 0
      %925 = vmatprep.subr.bf16.mxu0 0
      %926 = vmatpush2.bf16.xpose.msra.mxu0 0
      %927 = vmatprep.subr.bf16.mxu0 0
      %928 = vmatpush2.bf16.xpose.msra.mxu0 0
      %929 = vmatprep.subr.bf16.mxu0 0
      %930 = vmatpush2.bf16.xpose.msra.mxu0 0
      %931 = vmatprep.subr.bf16.mxu0 0
      %932 = vmatpush2.bf16.xpose.msra.mxu0 0
      %933 = vmatprep.subr.bf16.mxu0 0
      %934 = vmatpush2.bf16.xpose.msra.mxu0 0
      %935 = vmatprep.mubr.bf16.mxu0 0
      %936 = vmatmul.mubr.bf16.gmra.mxu0 %v898
      %v937 = vpop.f32.mrf.mxu0
      %v938 = vadd.f32 %v667, %v937
      %v939 = vpop.f32.mrf.mxu0
      %v940 = vpop.f32.mrf.mxu0
      %v941 = vpop.f32.mrf.mxu0
      %942 = vdwg.mxu0
      %943 = vrot.lane.b32.xlu0 %v789, 96
      %v944 = vpop.permute.xlu0 %943
      %v946 = vsel %vm800, %v789, 0
      %v949 = vsel %vm800, %v944, 0
      %951 = vmatprep.subr.bf16.mxu0 0
      %952 = vmatpush1.bf16.xpose.msra.mxu0 0
      %953 = vmatprep.subr.bf16.mxu0 0
      %954 = vmatpush1.bf16.xpose.msra.mxu0 0
      %955 = vmatprep.subr.bf16.mxu0 0
      %956 = vmatpush1.bf16.xpose.msra.mxu0 0
      %957 = vmatprep.subr.bf16.mxu0 0
      %958 = vmatpush1.bf16.xpose.msra.mxu0 0
      %959 = vmatprep.subr.bf16.mxu0 0
      %960 = vmatpush1.bf16.xpose.msra.mxu0 0
      %961 = vmatprep.subr.bf16.mxu0 0
      %962 = vmatpush1.bf16.xpose.msra.mxu0 0
      %963 = vmatprep.subr.bf16.mxu0 0
      %964 = vmatpush1.bf16.xpose.msra.mxu0 0
      %965 = vmatprep.subr.bf16.mxu0 0
      %966 = vmatpush1.bf16.xpose.msra.mxu0 %v949
      %967 = vmatprep.subr.bf16.mxu0 0
      %968 = vmatpush2.bf16.xpose.msra.mxu0 0
      %969 = vmatprep.subr.bf16.mxu0 0
      %970 = vmatpush2.bf16.xpose.msra.mxu0 0
      %971 = vmatprep.subr.bf16.mxu0 0
      %972 = vmatpush2.bf16.xpose.msra.mxu0 0
      %973 = vmatprep.subr.bf16.mxu0 0
      %974 = vmatpush2.bf16.xpose.msra.mxu0 0
      %975 = vmatprep.subr.bf16.mxu0 0
      %976 = vmatpush2.bf16.xpose.msra.mxu0 0
      %977 = vmatprep.subr.bf16.mxu0 0
      %978 = vmatpush2.bf16.xpose.msra.mxu0 0
      %979 = vmatprep.subr.bf16.mxu0 0
      %980 = vmatpush2.bf16.xpose.msra.mxu0 0
      %981 = vmatprep.subr.bf16.mxu0 0
      %982 = vmatpush2.bf16.xpose.msra.mxu0 0
      %983 = vmatprep.mubr.bf16.mxu0 0
      %984 = vmatmul.mubr.bf16.gmra.mxu0 %v946
      %v985 = vpop.f32.mrf.mxu0
      %v986 = vadd.f32 %v667, %v985
      %v987 = vpop.f32.mrf.mxu0
      %v988 = vpop.f32.mrf.mxu0
      %v989 = vpop.f32.mrf.mxu0
      %990 = vdwg.mxu0
      %991 = vrot.lane.b32.xlu0 %v791, 96
      %v992 = vpop.permute.xlu0 %991
      %v994 = vsel %vm800, %v791, 0
      %v997 = vsel %vm800, %v992, 0
      %999 = vmatprep.subr.bf16.mxu0 0
      %1000 = vmatpush1.bf16.xpose.msra.mxu0 0
      %1001 = vmatprep.subr.bf16.mxu0 0
      %1002 = vmatpush1.bf16.xpose.msra.mxu0 0
      %1003 = vmatprep.subr.bf16.mxu0 0
      %1004 = vmatpush1.bf16.xpose.msra.mxu0 0
      %1005 = vmatprep.subr.bf16.mxu0 0
      %1006 = vmatpush1.bf16.xpose.msra.mxu0 0
      %1007 = vmatprep.subr.bf16.mxu0 0
      %1008 = vmatpush1.bf16.xpose.msra.mxu0 0
      %1009 = vmatprep.subr.bf16.mxu0 0
      %1010 = vmatpush1.bf16.xpose.msra.mxu0 0
      %1011 = vmatprep.subr.bf16.mxu0 0
      %1012 = vmatpush1.bf16.xpose.msra.mxu0 0
      %1013 = vmatprep.subr.bf16.mxu0 0
      %1014 = vmatpush1.bf16.xpose.msra.mxu0 %v997
      %1015 = vmatprep.subr.bf16.mxu0 0
      %1016 = vmatpush2.bf16.xpose.msra.mxu0 0
      %1017 = vmatprep.subr.bf16.mxu0 0
      %1018 = vmatpush2.bf16.xpose.msra.mxu0 0
      %1019 = vmatprep.subr.bf16.mxu0 0
      %1020 = vmatpush2.bf16.xpose.msra.mxu0 0
      %1021 = vmatprep.subr.bf16.mxu0 0
      %1022 = vmatpush2.bf16.xpose.msra.mxu0 0
      %1023 = vmatprep.subr.bf16.mxu0 0
      %1024 = vmatpush2.bf16.xpose.msra.mxu0 0
      %1025 = vmatprep.subr.bf16.mxu0 0
      %1026 = vmatpush2.bf16.xpose.msra.mxu0 0
      %1027 = vmatprep.subr.bf16.mxu0 0
      %1028 = vmatpush2.bf16.xpose.msra.mxu0 0
      %1029 = vmatprep.subr.bf16.mxu0 0
      %1030 = vmatpush2.bf16.xpose.msra.mxu0 0
      %1031 = vmatprep.mubr.bf16.mxu0 0
      %1032 = vmatmul.mubr.bf16.gmra.mxu0 %v994
      %v1033 = vpop.f32.mrf.mxu0
      %v1034 = vadd.f32 %v667, %v1033
      %v1035 = vpop.f32.mrf.mxu0
      %v1036 = vpop.f32.mrf.mxu0
      %v1037 = vpop.f32.mrf.mxu0
      %1038 = vdwg.mxu0
      %1039 = vrot.lane.b32.xlu0 %v793, 96
      %v1040 = vpop.permute.xlu0 %1039
      %v1042 = vsel %vm800, %v793, 0
      %v1045 = vsel %vm800, %v1040, 0
      %1047 = vmatprep.subr.bf16.mxu0 0
      %1048 = vmatpush1.bf16.xpose.msra.mxu0 0
      %1049 = vmatprep.subr.bf16.mxu0 0
      %1050 = vmatpush1.bf16.xpose.msra.mxu0 0
      %1051 = vmatprep.subr.bf16.mxu0 0
      %1052 = vmatpush1.bf16.xpose.msra.mxu0 0
      %1053 = vmatprep.subr.bf16.mxu0 0
      %1054 = vmatpush1.bf16.xpose.msra.mxu0 0
      %1055 = vmatprep.subr.bf16.mxu0 0
      %1056 = vmatpush1.bf16.xpose.msra.mxu0 0
      %1057 = vmatprep.subr.bf16.mxu0 0
      %1058 = vmatpush1.bf16.xpose.msra.mxu0 0
      %1059 = vmatprep.subr.bf16.mxu0 0
      %1060 = vmatpush1.bf16.xpose.msra.mxu0 0
      %1061 = vmatprep.subr.bf16.mxu0 0
      %1062 = vmatpush1.bf16.xpose.msra.mxu0 %v1045
      %1063 = vmatprep.subr.bf16.mxu0 0
      %1064 = vmatpush2.bf16.xpose.msra.mxu0 0
      %1065 = vmatprep.subr.bf16.mxu0 0
      %1066 = vmatpush2.bf16.xpose.msra.mxu0 0
      %1067 = vmatprep.subr.bf16.mxu0 0
      %1068 = vmatpush2.bf16.xpose.msra.mxu0 0
      %1069 = vmatprep.subr.bf16.mxu0 0
      %1070 = vmatpush2.bf16.xpose.msra.mxu0 0
      %1071 = vmatprep.subr.bf16.mxu0 0
      %1072 = vmatpush2.bf16.xpose.msra.mxu0 0
      %1073 = vmatprep.subr.bf16.mxu0 0
      %1074 = vmatpush2.bf16.xpose.msra.mxu0 0
      %1075 = vmatprep.subr.bf16.mxu0 0
      %1076 = vmatpush2.bf16.xpose.msra.mxu0 0
      %1077 = vmatprep.subr.bf16.mxu0 0
      %1078 = vmatpush2.bf16.xpose.msra.mxu0 0
      %1079 = vmatprep.mubr.bf16.mxu0 0
      %1080 = vmatmul.mubr.bf16.gmra.mxu0 %v1042
      %v1081 = vpop.f32.mrf.mxu0
      %v1082 = vadd.f32 %v667, %v1081
      %v1083 = vpop.f32.mrf.mxu0
      %v1084 = vpop.f32.mrf.mxu0
      %v1085 = vpop.f32.mrf.mxu0
      %1086 = vdwg.mxu0
      %1087 = vrot.lane.b32.xlu0 %v795, 96
      %v1088 = vpop.permute.xlu0 %1087
      %v1090 = vsel %vm800, %v795, 0
      %v1093 = vsel %vm800, %v1088, 0
      %1095 = vmatprep.subr.bf16.mxu0 0
      %1096 = vmatpush1.bf16.xpose.msra.mxu0 0
      %1097 = vmatprep.subr.bf16.mxu0 0
      %1098 = vmatpush1.bf16.xpose.msra.mxu0 0
      %1099 = vmatprep.subr.bf16.mxu0 0
      %1100 = vmatpush1.bf16.xpose.msra.mxu0 0
      %1101 = vmatprep.subr.bf16.mxu0 0
      %1102 = vmatpush1.bf16.xpose.msra.mxu0 0
      %1103 = vmatprep.subr.bf16.mxu0 0
      %1104 = vmatpush1.bf16.xpose.msra.mxu0 0
      %1105 = vmatprep.subr.bf16.mxu0 0
      %1106 = vmatpush1.bf16.xpose.msra.mxu0 0
      %1107 = vmatprep.subr.bf16.mxu0 0
      %1108 = vmatpush1.bf16.xpose.msra.mxu0 0
      %1109 = vmatprep.subr.bf16.mxu0 0
      %1110 = vmatpush1.bf16.xpose.msra.mxu0 %v1093
      %1111 = vmatprep.subr.bf16.mxu0 0
      %1112 = vmatpush2.bf16.xpose.msra.mxu0 0
      %1113 = vmatprep.subr.bf16.mxu0 0
      %1114 = vmatpush2.bf16.xpose.msra.mxu0 0
      %1115 = vmatprep.subr.bf16.mxu0 0
      %1116 = vmatpush2.bf16.xpose.msra.mxu0 0
      %1117 = vmatprep.subr.bf16.mxu0 0
      %1118 = vmatpush2.bf16.xpose.msra.mxu0 0
      %1119 = vmatprep.subr.bf16.mxu0 0
      %1120 = vmatpush2.bf16.xpose.msra.mxu0 0
      %1121 = vmatprep.subr.bf16.mxu0 0
      %1122 = vmatpush2.bf16.xpose.msra.mxu0 0
      %1123 = vmatprep.subr.bf16.mxu0 0
      %1124 = vmatpush2.bf16.xpose.msra.mxu0 0
      %1125 = vmatprep.subr.bf16.mxu0 0
      %1126 = vmatpush2.bf16.xpose.msra.mxu0 0
      %1127 = vmatprep.mubr.bf16.mxu0 0
      %1128 = vmatmul.mubr.bf16.gmra.mxu0 %v1090
      %v1129 = vpop.f32.mrf.mxu0
      %v1130 = vadd.f32 %v667, %v1129
      %v1131 = vpop.f32.mrf.mxu0
      %v1132 = vpop.f32.mrf.mxu0
      %v1133 = vpop.f32.mrf.mxu0
      %1134 = vdwg.mxu0
      %1135 = vrot.lane.b32.xlu0 %v797, 96
      %v1136 = vpop.permute.xlu0 %1135
      %v1138 = vsel %vm800, %v797, 0
      %v1141 = vsel %vm800, %v1136, 0
      %1143 = vmatprep.subr.bf16.mxu0 0
      %1144 = vmatpush1.bf16.xpose.msra.mxu0 0
      %1145 = vmatprep.subr.bf16.mxu0 0
      %1146 = vmatpush1.bf16.xpose.msra.mxu0 0
      %1147 = vmatprep.subr.bf16.mxu0 0
      %1148 = vmatpush1.bf16.xpose.msra.mxu0 0
      %1149 = vmatprep.subr.bf16.mxu0 0
      %1150 = vmatpush1.bf16.xpose.msra.mxu0 0
      %1151 = vmatprep.subr.bf16.mxu0 0
      %1152 = vmatpush1.bf16.xpose.msra.mxu0 0
      %1153 = vmatprep.subr.bf16.mxu0 0
      %1154 = vmatpush1.bf16.xpose.msra.mxu0 0
      %1155 = vmatprep.subr.bf16.mxu0 0
      %1156 = vmatpush1.bf16.xpose.msra.mxu0 0
      %1157 = vmatprep.subr.bf16.mxu0 0
      %1158 = vmatpush1.bf16.xpose.msra.mxu0 %v1141
      %1159 = vmatprep.subr.bf16.mxu0 0
      %1160 = vmatpush2.bf16.xpose.msra.mxu0 0
      %1161 = vmatprep.subr.bf16.mxu0 0
      %1162 = vmatpush2.bf16.xpose.msra.mxu0 0
      %1163 = vmatprep.subr.bf16.mxu0 0
      %1164 = vmatpush2.bf16.xpose.msra.mxu0 0
      %1165 = vmatprep.subr.bf16.mxu0 0
      %1166 = vmatpush2.bf16.xpose.msra.mxu0 0
      %1167 = vmatprep.subr.bf16.mxu0 0
      %1168 = vmatpush2.bf16.xpose.msra.mxu0 0
      %1169 = vmatprep.subr.bf16.mxu0 0
      %1170 = vmatpush2.bf16.xpose.msra.mxu0 0
      %1171 = vmatprep.subr.bf16.mxu0 0
      %1172 = vmatpush2.bf16.xpose.msra.mxu0 0
      %1173 = vmatprep.subr.bf16.mxu0 0
      %1174 = vmatpush2.bf16.xpose.msra.mxu0 0
      %1175 = vmatprep.mubr.bf16.mxu0 0
      %1176 = vmatmul.mubr.bf16.gmra.mxu0 %v1138
      %v1177 = vpop.f32.mrf.mxu0
      %v1178 = vadd.f32 %v667, %v1177
      %v1179 = vpop.f32.mrf.mxu0
      %v1180 = vpop.f32.mrf.mxu0
      %v1181 = vpop.f32.mrf.mxu0
      %1182 = vdwg.mxu0
      %v1183 = vsel %vm800, %v842, -inf
      %1184 = vmax.xlane.f32.xlu0 %v1183
      %v1185 = vpop.xlane.xlu0 %1184
      %v1186 = vsel %vm800, %v890, -inf
      %1187 = vmax.xlane.f32.xlu0 %v1186
      %v1188 = vpop.xlane.xlu0 %1187
      %v1189 = vsel %vm800, %v938, -inf
      %1190 = vmax.xlane.f32.xlu0 %v1189
      %v1191 = vpop.xlane.xlu0 %1190
      %v1192 = vsel %vm800, %v986, -inf
      %1193 = vmax.xlane.f32.xlu0 %v1192
      %v1194 = vpop.xlane.xlu0 %1193
      %v1195 = vsel %vm800, %v1034, -inf
      %1196 = vmax.xlane.f32.xlu0 %v1195
      %v1197 = vpop.xlane.xlu0 %1196
      %v1198 = vsel %vm800, %v1082, -inf
      %1199 = vmax.xlane.f32.xlu0 %v1198
      %v1200 = vpop.xlane.xlu0 %1199
      %v1201 = vsel %vm800, %v1130, -inf
      %1202 = vmax.xlane.f32.xlu0 %v1201
      %v1203 = vpop.xlane.xlu0 %1202
      %v1204 = vsel %vm800, %v1178, -inf
      %1205 = vmax.xlane.f32.xlu0 %v1204
      %v1206 = vpop.xlane.xlu0 %1205
      %v1207 = vsub.f32 %v842, %v1185
      %v1208 = vsub.f32 %v890, %v1188
      %v1209 = vsub.f32 %v938, %v1191
      %v1210 = vsub.f32 %v986, %v1194
      %v1211 = vsub.f32 %v1034, %v1197
      %v1212 = vsub.f32 %v1082, %v1200
      %v1213 = vsub.f32 %v1130, %v1203
      %v1214 = vsub.f32 %v1178, %v1206
      %v1215 = vmul.f32 %v1207, 1.442695
      %v1216 = vpow.pop %v1215
      %v1217 = vmul.f32 %v1208, 1.442695
      %v1218 = vpow.pop %v1217
      %v1219 = vmul.f32 %v1209, 1.442695
      %v1220 = vpow.pop %v1219
      %v1221 = vmul.f32 %v1210, 1.442695
      %v1222 = vpow.pop %v1221
      %v1223 = vmul.f32 %v1211, 1.442695
      %v1224 = vpow.pop %v1223
      %v1225 = vmul.f32 %v1212, 1.442695
      %v1226 = vpow.pop %v1225
      %v1227 = vmul.f32 %v1213, 1.442695
      %v1228 = vpow.pop %v1227
      %v1229 = vmul.f32 %v1214, 1.442695
      %v1230 = vpow.pop %v1229
      %v1231 = vsel %vm800, %v1216, 0.0
      %1232 = vadd.xlane.f32.xlu0 %v1231
      %v1233 = vpop.xlane.xlu0 %1232
      %v1234 = vsel %vm800, %v1218, 0.0
      %1235 = vadd.xlane.f32.xlu0 %v1234
      %v1236 = vpop.xlane.xlu0 %1235
      %v1237 = vsel %vm800, %v1220, 0.0
      %1238 = vadd.xlane.f32.xlu0 %v1237
      %v1239 = vpop.xlane.xlu0 %1238
      %v1240 = vsel %vm800, %v1222, 0.0
      %1241 = vadd.xlane.f32.xlu0 %v1240
      %v1242 = vpop.xlane.xlu0 %1241
      %v1243 = vsel %vm800, %v1224, 0.0
      %1244 = vadd.xlane.f32.xlu0 %v1243
      %v1245 = vpop.xlane.xlu0 %1244
      %v1246 = vsel %vm800, %v1226, 0.0
      %1247 = vadd.xlane.f32.xlu0 %v1246
      %v1248 = vpop.xlane.xlu0 %1247
      %v1249 = vsel %vm800, %v1228, 0.0
      %1250 = vadd.xlane.f32.xlu0 %v1249
      %v1251 = vpop.xlane.xlu0 %1250
      %v1252 = vsel %vm800, %v1230, 0.0
      %1253 = vadd.xlane.f32.xlu0 %v1252
      %v1254 = vpop.xlane.xlu0 %1253
      %v1255 = vrcp.pop %v1233
      %v1256 = vrcp.pop %v1236
      %v1257 = vrcp.pop %v1239
      %v1258 = vrcp.pop %v1242
      %v1259 = vrcp.pop %v1245
      %v1260 = vrcp.pop %v1248
      %v1261 = vrcp.pop %v1251
      %v1262 = vrcp.pop %v1254
      %v1263 = vmul.f32 %v1216, %v1255
      %v1264 = vmul.f32 %v1218, %v1256
      %v1265 = vmul.f32 %v1220, %v1257
      %v1266 = vmul.f32 %v1222, %v1258
      %v1267 = vmul.f32 %v1224, %v1259
      %v1268 = vmul.f32 %v1226, %v1260
      %v1269 = vmul.f32 %v1228, %v1261
      %v1270 = vmul.f32 %v1230, %v1262
      %v1271 = vpack.c.bf16 %v1263, %v1263
      %v1272 = vpack.c.bf16 %v1264, %v1264
      %v1273 = vpack.c.bf16 %v1265, %v1265
      %v1274 = vpack.c.bf16 %v1266, %v1266
      %v1275 = vpack.c.bf16 %v1267, %v1267
      %v1276 = vpack.c.bf16 %v1268, %v1268
      %v1277 = vpack.c.bf16 %v1269, %v1269
      %v1278 = vpack.c.bf16 %v1270, %v1270
      %1279 = vrot.lane.b32.xlu0 %v782, 64
      %v1280 = vpop.permute.xlu0 %1279
      %v1282 = vsel %vm800, %v1271, 0
      %vm1284 = vcmask 1043456
      %v1286 = vsel %vm1284, %v1280, 0
      %1288 = vmatprep.subr.bf16.mxu0 0
      %1289 = vmatpush1.bf16.msra.mxu0 0
      %1290 = vmatprep.subr.bf16.mxu0 0
      %1291 = vmatpush1.bf16.msra.mxu0 0
      %1292 = vmatprep.subr.bf16.mxu0 0
      %1293 = vmatpush1.bf16.msra.mxu0 0
      %1294 = vmatprep.subr.bf16.mxu0 0
      %1295 = vmatpush1.bf16.msra.mxu0 0
      %1296 = vmatprep.subr.bf16.mxu0 0
      %1297 = vmatpush1.bf16.msra.mxu0 0
      %1298 = vmatprep.subr.bf16.mxu0 0
      %1299 = vmatpush1.bf16.msra.mxu0 0
      %1300 = vmatprep.subr.bf16.mxu0 0
      %1301 = vmatpush1.bf16.msra.mxu0 0
      %1302 = vmatprep.subr.bf16.mxu0 0
      %1303 = vmatpush1.bf16.msra.mxu0 %v1286
      %1304 = vmatprep.subr.bf16.mxu0 0
      %1305 = vmatpush2.bf16.msra.mxu0 0
      %1306 = vmatprep.subr.bf16.mxu0 0
      %1307 = vmatpush2.bf16.msra.mxu0 0
      %1308 = vmatprep.subr.bf16.mxu0 0
      %1309 = vmatpush2.bf16.msra.mxu0 0
      %1310 = vmatprep.subr.bf16.mxu0 0
      %1311 = vmatpush2.bf16.msra.mxu0 0
      %1312 = vmatprep.subr.bf16.mxu0 0
      %1313 = vmatpush2.bf16.msra.mxu0 0
      %1314 = vmatprep.subr.bf16.mxu0 0
      %1315 = vmatpush2.bf16.msra.mxu0 0
      %1316 = vmatprep.subr.bf16.mxu0 0
      %1317 = vmatpush2.bf16.msra.mxu0 0
      %1318 = vmatprep.subr.bf16.mxu0 0
      %1319 = vmatpush2.bf16.msra.mxu0 0
      %1320 = vmatprep.mubr.bf16.mxu0 0
      %1321 = vmatmul.mubr.bf16.gmra.mxu0 %v1282
      %v1322 = vpop.f32.mrf.mxu0
      %v1323 = vadd.f32 0.0, %v1322
      %v1324 = vpop.f32.mrf.mxu0
      %v1325 = vpop.f32.mrf.mxu0
      %v1326 = vpop.f32.mrf.mxu0
      %1327 = vdwg.mxu0
      %1328 = vrot.lane.b32.xlu0 %v783, 64
      %v1329 = vpop.permute.xlu0 %1328
      %v1331 = vsel %vm800, %v1272, 0
      %v1334 = vsel %vm1284, %v1329, 0
      %1336 = vmatprep.subr.bf16.mxu0 0
      %1337 = vmatpush1.bf16.msra.mxu0 0
      %1338 = vmatprep.subr.bf16.mxu0 0
      %1339 = vmatpush1.bf16.msra.mxu0 0
      %1340 = vmatprep.subr.bf16.mxu0 0
      %1341 = vmatpush1.bf16.msra.mxu0 0
      %1342 = vmatprep.subr.bf16.mxu0 0
      %1343 = vmatpush1.bf16.msra.mxu0 0
      %1344 = vmatprep.subr.bf16.mxu0 0
      %1345 = vmatpush1.bf16.msra.mxu0 0
      %1346 = vmatprep.subr.bf16.mxu0 0
      %1347 = vmatpush1.bf16.msra.mxu0 0
      %1348 = vmatprep.subr.bf16.mxu0 0
      %1349 = vmatpush1.bf16.msra.mxu0 0
      %1350 = vmatprep.subr.bf16.mxu0 0
      %1351 = vmatpush1.bf16.msra.mxu0 %v1334
      %1352 = vmatprep.subr.bf16.mxu0 0
      %1353 = vmatpush2.bf16.msra.mxu0 0
      %1354 = vmatprep.subr.bf16.mxu0 0
      %1355 = vmatpush2.bf16.msra.mxu0 0
      %1356 = vmatprep.subr.bf16.mxu0 0
      %1357 = vmatpush2.bf16.msra.mxu0 0
      %1358 = vmatprep.subr.bf16.mxu0 0
      %1359 = vmatpush2.bf16.msra.mxu0 0
      %1360 = vmatprep.subr.bf16.mxu0 0
      %1361 = vmatpush2.bf16.msra.mxu0 0
      %1362 = vmatprep.subr.bf16.mxu0 0
      %1363 = vmatpush2.bf16.msra.mxu0 0
      %1364 = vmatprep.subr.bf16.mxu0 0
      %1365 = vmatpush2.bf16.msra.mxu0 0
      %1366 = vmatprep.subr.bf16.mxu0 0
      %1367 = vmatpush2.bf16.msra.mxu0 0
      %1368 = vmatprep.mubr.bf16.mxu0 0
      %1369 = vmatmul.mubr.bf16.gmra.mxu0 %v1331
      %v1370 = vpop.f32.mrf.mxu0
      %v1371 = vadd.f32 0.0, %v1370
      %v1372 = vpop.f32.mrf.mxu0
      %v1373 = vpop.f32.mrf.mxu0
      %v1374 = vpop.f32.mrf.mxu0
      %1375 = vdwg.mxu0
      %1376 = vrot.lane.b32.xlu0 %v787, 64
      %v1377 = vpop.permute.xlu0 %1376
      %v1379 = vsel %vm800, %v1273, 0
      %v1382 = vsel %vm1284, %v1377, 0
      %1384 = vmatprep.subr.bf16.mxu0 0
      %1385 = vmatpush1.bf16.msra.mxu0 0
      %1386 = vmatprep.subr.bf16.mxu0 0
      %1387 = vmatpush1.bf16.msra.mxu0 0
      %1388 = vmatprep.subr.bf16.mxu0 0
      %1389 = vmatpush1.bf16.msra.mxu0 0
      %1390 = vmatprep.subr.bf16.mxu0 0
      %1391 = vmatpush1.bf16.msra.mxu0 0
      %1392 = vmatprep.subr.bf16.mxu0 0
      %1393 = vmatpush1.bf16.msra.mxu0 0
      %1394 = vmatprep.subr.bf16.mxu0 0
      %1395 = vmatpush1.bf16.msra.mxu0 0
      %1396 = vmatprep.subr.bf16.mxu0 0
      %1397 = vmatpush1.bf16.msra.mxu0 0
      %1398 = vmatprep.subr.bf16.mxu0 0
      %1399 = vmatpush1.bf16.msra.mxu0 %v1382
      %1400 = vmatprep.subr.bf16.mxu0 0
      %1401 = vmatpush2.bf16.msra.mxu0 0
      %1402 = vmatprep.subr.bf16.mxu0 0
      %1403 = vmatpush2.bf16.msra.mxu0 0
      %1404 = vmatprep.subr.bf16.mxu0 0
      %1405 = vmatpush2.bf16.msra.mxu0 0
      %1406 = vmatprep.subr.bf16.mxu0 0
      %1407 = vmatpush2.bf16.msra.mxu0 0
      %1408 = vmatprep.subr.bf16.mxu0 0
      %1409 = vmatpush2.bf16.msra.mxu0 0
      %1410 = vmatprep.subr.bf16.mxu0 0
      %1411 = vmatpush2.bf16.msra.mxu0 0
      %1412 = vmatprep.subr.bf16.mxu0 0
      %1413 = vmatpush2.bf16.msra.mxu0 0
      %1414 = vmatprep.subr.bf16.mxu0 0
      %1415 = vmatpush2.bf16.msra.mxu0 0
      %1416 = vmatprep.mubr.bf16.mxu0 0
      %1417 = vmatmul.mubr.bf16.gmra.mxu0 %v1379
      %v1418 = vpop.f32.mrf.mxu0
      %v1419 = vadd.f32 0.0, %v1418
      %v1420 = vpop.f32.mrf.mxu0
      %v1421 = vpop.f32.mrf.mxu0
      %v1422 = vpop.f32.mrf.mxu0
      %1423 = vdwg.mxu0
      %1424 = vrot.lane.b32.xlu0 %v789, 64
      %v1425 = vpop.permute.xlu0 %1424
      %v1427 = vsel %vm800, %v1274, 0
      %v1430 = vsel %vm1284, %v1425, 0
      %1432 = vmatprep.subr.bf16.mxu0 0
      %1433 = vmatpush1.bf16.msra.mxu0 0
      %1434 = vmatprep.subr.bf16.mxu0 0
      %1435 = vmatpush1.bf16.msra.mxu0 0
      %1436 = vmatprep.subr.bf16.mxu0 0
      %1437 = vmatpush1.bf16.msra.mxu0 0
      %1438 = vmatprep.subr.bf16.mxu0 0
      %1439 = vmatpush1.bf16.msra.mxu0 0
      %1440 = vmatprep.subr.bf16.mxu0 0
      %1441 = vmatpush1.bf16.msra.mxu0 0
      %1442 = vmatprep.subr.bf16.mxu0 0
      %1443 = vmatpush1.bf16.msra.mxu0 0
      %1444 = vmatprep.subr.bf16.mxu0 0
      %1445 = vmatpush1.bf16.msra.mxu0 0
      %1446 = vmatprep.subr.bf16.mxu0 0
      %1447 = vmatpush1.bf16.msra.mxu0 %v1430
      %1448 = vmatprep.subr.bf16.mxu0 0
      %1449 = vmatpush2.bf16.msra.mxu0 0
      %1450 = vmatprep.subr.bf16.mxu0 0
      %1451 = vmatpush2.bf16.msra.mxu0 0
      %1452 = vmatprep.subr.bf16.mxu0 0
      %1453 = vmatpush2.bf16.msra.mxu0 0
      %1454 = vmatprep.subr.bf16.mxu0 0
      %1455 = vmatpush2.bf16.msra.mxu0 0
      %1456 = vmatprep.subr.bf16.mxu0 0
      %1457 = vmatpush2.bf16.msra.mxu0 0
      %1458 = vmatprep.subr.bf16.mxu0 0
      %1459 = vmatpush2.bf16.msra.mxu0 0
      %1460 = vmatprep.subr.bf16.mxu0 0
      %1461 = vmatpush2.bf16.msra.mxu0 0
      %1462 = vmatprep.subr.bf16.mxu0 0
      %1463 = vmatpush2.bf16.msra.mxu0 0
      %1464 = vmatprep.mubr.bf16.mxu0 0
      %1465 = vmatmul.mubr.bf16.gmra.mxu0 %v1427
      %v1466 = vpop.f32.mrf.mxu0
      %v1467 = vadd.f32 0.0, %v1466
      %v1468 = vpop.f32.mrf.mxu0
      %v1469 = vpop.f32.mrf.mxu0
      %v1470 = vpop.f32.mrf.mxu0
      %1471 = vdwg.mxu0
      %1472 = vrot.lane.b32.xlu0 %v791, 64
      %v1473 = vpop.permute.xlu0 %1472
      %v1475 = vsel %vm800, %v1275, 0
      %v1478 = vsel %vm1284, %v1473, 0
      %1480 = vmatprep.subr.bf16.mxu0 0
      %1481 = vmatpush1.bf16.msra.mxu0 0
      %1482 = vmatprep.subr.bf16.mxu0 0
      %1483 = vmatpush1.bf16.msra.mxu0 0
      %1484 = vmatprep.subr.bf16.mxu0 0
      %1485 = vmatpush1.bf16.msra.mxu0 0
      %1486 = vmatprep.subr.bf16.mxu0 0
      %1487 = vmatpush1.bf16.msra.mxu0 0
      %1488 = vmatprep.subr.bf16.mxu0 0
      %1489 = vmatpush1.bf16.msra.mxu0 0
      %1490 = vmatprep.subr.bf16.mxu0 0
      %1491 = vmatpush1.bf16.msra.mxu0 0
      %1492 = vmatprep.subr.bf16.mxu0 0
      %1493 = vmatpush1.bf16.msra.mxu0 0
      %1494 = vmatprep.subr.bf16.mxu0 0
      %1495 = vmatpush1.bf16.msra.mxu0 %v1478
      %1496 = vmatprep.subr.bf16.mxu0 0
      %1497 = vmatpush2.bf16.msra.mxu0 0
      %1498 = vmatprep.subr.bf16.mxu0 0
      %1499 = vmatpush2.bf16.msra.mxu0 0
      %1500 = vmatprep.subr.bf16.mxu0 0
      %1501 = vmatpush2.bf16.msra.mxu0 0
      %1502 = vmatprep.subr.bf16.mxu0 0
      %1503 = vmatpush2.bf16.msra.mxu0 0
      %1504 = vmatprep.subr.bf16.mxu0 0
      %1505 = vmatpush2.bf16.msra.mxu0 0
      %1506 = vmatprep.subr.bf16.mxu0 0
      %1507 = vmatpush2.bf16.msra.mxu0 0
      %1508 = vmatprep.subr.bf16.mxu0 0
      %1509 = vmatpush2.bf16.msra.mxu0 0
      %1510 = vmatprep.subr.bf16.mxu0 0
      %1511 = vmatpush2.bf16.msra.mxu0 0
      %1512 = vmatprep.mubr.bf16.mxu0 0
      %1513 = vmatmul.mubr.bf16.gmra.mxu0 %v1475
      %v1514 = vpop.f32.mrf.mxu0
      %v1515 = vadd.f32 0.0, %v1514
      %v1516 = vpop.f32.mrf.mxu0
      %v1517 = vpop.f32.mrf.mxu0
      %v1518 = vpop.f32.mrf.mxu0
      %1519 = vdwg.mxu0
      %1520 = vrot.lane.b32.xlu0 %v793, 64
      %v1521 = vpop.permute.xlu0 %1520
      %v1523 = vsel %vm800, %v1276, 0
      %v1526 = vsel %vm1284, %v1521, 0
      %1528 = vmatprep.subr.bf16.mxu0 0
      %1529 = vmatpush1.bf16.msra.mxu0 0
      %1530 = vmatprep.subr.bf16.mxu0 0
      %1531 = vmatpush1.bf16.msra.mxu0 0
      %1532 = vmatprep.subr.bf16.mxu0 0
      %1533 = vmatpush1.bf16.msra.mxu0 0
      %1534 = vmatprep.subr.bf16.mxu0 0
      %1535 = vmatpush1.bf16.msra.mxu0 0
      %1536 = vmatprep.subr.bf16.mxu0 0
      %1537 = vmatpush1.bf16.msra.mxu0 0
      %1538 = vmatprep.subr.bf16.mxu0 0
      %1539 = vmatpush1.bf16.msra.mxu0 0
      %1540 = vmatprep.subr.bf16.mxu0 0
      %1541 = vmatpush1.bf16.msra.mxu0 0
      %1542 = vmatprep.subr.bf16.mxu0 0
      %1543 = vmatpush1.bf16.msra.mxu0 %v1526
      %1544 = vmatprep.subr.bf16.mxu0 0
      %1545 = vmatpush2.bf16.msra.mxu0 0
      %1546 = vmatprep.subr.bf16.mxu0 0
      %1547 = vmatpush2.bf16.msra.mxu0 0
      %1548 = vmatprep.subr.bf16.mxu0 0
      %1549 = vmatpush2.bf16.msra.mxu0 0
      %1550 = vmatprep.subr.bf16.mxu0 0
      %1551 = vmatpush2.bf16.msra.mxu0 0
      %1552 = vmatprep.subr.bf16.mxu0 0
      %1553 = vmatpush2.bf16.msra.mxu0 0
      %1554 = vmatprep.subr.bf16.mxu0 0
      %1555 = vmatpush2.bf16.msra.mxu0 0
      %1556 = vmatprep.subr.bf16.mxu0 0
      %1557 = vmatpush2.bf16.msra.mxu0 0
      %1558 = vmatprep.subr.bf16.mxu0 0
      %1559 = vmatpush2.bf16.msra.mxu0 0
      %1560 = vmatprep.mubr.bf16.mxu0 0
      %1561 = vmatmul.mubr.bf16.gmra.mxu0 %v1523
      %v1562 = vpop.f32.mrf.mxu0
      %v1563 = vadd.f32 0.0, %v1562
      %v1564 = vpop.f32.mrf.mxu0
      %v1565 = vpop.f32.mrf.mxu0
      %v1566 = vpop.f32.mrf.mxu0
      %1567 = vdwg.mxu0
      %1568 = vrot.lane.b32.xlu0 %v795, 64
      %v1569 = vpop.permute.xlu0 %1568
      %v1571 = vsel %vm800, %v1277, 0
      %v1574 = vsel %vm1284, %v1569, 0
      %1576 = vmatprep.subr.bf16.mxu0 0
      %1577 = vmatpush1.bf16.msra.mxu0 0
      %1578 = vmatprep.subr.bf16.mxu0 0
      %1579 = vmatpush1.bf16.msra.mxu0 0
      %1580 = vmatprep.subr.bf16.mxu0 0
      %1581 = vmatpush1.bf16.msra.mxu0 0
      %1582 = vmatprep.subr.bf16.mxu0 0
      %1583 = vmatpush1.bf16.msra.mxu0 0
      %1584 = vmatprep.subr.bf16.mxu0 0
      %1585 = vmatpush1.bf16.msra.mxu0 0
      %1586 = vmatprep.subr.bf16.mxu0 0
      %1587 = vmatpush1.bf16.msra.mxu0 0
      %1588 = vmatprep.subr.bf16.mxu0 0
      %1589 = vmatpush1.bf16.msra.mxu0 0
      %1590 = vmatprep.subr.bf16.mxu0 0
      %1591 = vmatpush1.bf16.msra.mxu0 %v1574
      %1592 = vmatprep.subr.bf16.mxu0 0
      %1593 = vmatpush2.bf16.msra.mxu0 0
      %1594 = vmatprep.subr.bf16.mxu0 0
      %1595 = vmatpush2.bf16.msra.mxu0 0
      %1596 = vmatprep.subr.bf16.mxu0 0
      %1597 = vmatpush2.bf16.msra.mxu0 0
      %1598 = vmatprep.subr.bf16.mxu0 0
      %1599 = vmatpush2.bf16.msra.mxu0 0
      %1600 = vmatprep.subr.bf16.mxu0 0
      %1601 = vmatpush2.bf16.msra.mxu0 0
      %1602 = vmatprep.subr.bf16.mxu0 0
      %1603 = vmatpush2.bf16.msra.mxu0 0
      %1604 = vmatprep.subr.bf16.mxu0 0
      %1605 = vmatpush2.bf16.msra.mxu0 0
      %1606 = vmatprep.subr.bf16.mxu0 0
      %1607 = vmatpush2.bf16.msra.mxu0 0
      %1608 = vmatprep.mubr.bf16.mxu0 0
      %1609 = vmatmul.mubr.bf16.gmra.mxu0 %v1571
      %v1610 = vpop.f32.mrf.mxu0
      %v1611 = vadd.f32 0.0, %v1610
      %v1612 = vpop.f32.mrf.mxu0
      %v1613 = vpop.f32.mrf.mxu0
      %v1614 = vpop.f32.mrf.mxu0
      %1615 = vdwg.mxu0
      %1616 = vrot.lane.b32.xlu0 %v797, 64
      %v1617 = vpop.permute.xlu0 %1616
      %v1619 = vsel %vm800, %v1278, 0
      %v1622 = vsel %vm1284, %v1617, 0
      %1624 = vmatprep.subr.bf16.mxu0 0
      %1625 = vmatpush1.bf16.msra.mxu0 0
      %1626 = vmatprep.subr.bf16.mxu0 0
      %1627 = vmatpush1.bf16.msra.mxu0 0
      %1628 = vmatprep.subr.bf16.mxu0 0
      %1629 = vmatpush1.bf16.msra.mxu0 0
      %1630 = vmatprep.subr.bf16.mxu0 0
      %1631 = vmatpush1.bf16.msra.mxu0 0
      %1632 = vmatprep.subr.bf16.mxu0 0
      %1633 = vmatpush1.bf16.msra.mxu0 0
      %1634 = vmatprep.subr.bf16.mxu0 0
      %1635 = vmatpush1.bf16.msra.mxu0 0
      %1636 = vmatprep.subr.bf16.mxu0 0
      %1637 = vmatpush1.bf16.msra.mxu0 0
      %1638 = vmatprep.subr.bf16.mxu0 0
      %1639 = vmatpush1.bf16.msra.mxu0 %v1622
      %1640 = vmatprep.subr.bf16.mxu0 0
      %1641 = vmatpush2.bf16.msra.mxu0 0
      %1642 = vmatprep.subr.bf16.mxu0 0
      %1643 = vmatpush2.bf16.msra.mxu0 0
      %1644 = vmatprep.subr.bf16.mxu0 0
      %1645 = vmatpush2.bf16.msra.mxu0 0
      %1646 = vmatprep.subr.bf16.mxu0 0
      %1647 = vmatpush2.bf16.msra.mxu0 0
      %1648 = vmatprep.subr.bf16.mxu0 0
      %1649 = vmatpush2.bf16.msra.mxu0 0
      %1650 = vmatprep.subr.bf16.mxu0 0
      %1651 = vmatpush2.bf16.msra.mxu0 0
      %1652 = vmatprep.subr.bf16.mxu0 0
      %1653 = vmatpush2.bf16.msra.mxu0 0
      %1654 = vmatprep.subr.bf16.mxu0 0
      %1655 = vmatpush2.bf16.msra.mxu0 0
      %1656 = vmatprep.mubr.bf16.mxu0 0
      %1657 = vmatmul.mubr.bf16.gmra.mxu0 %v1619
      %v1658 = vpop.f32.mrf.mxu0
      %v1659 = vadd.f32 0.0, %v1658
      %v1660 = vpop.f32.mrf.mxu0
      %v1661 = vpop.f32.mrf.mxu0
      %v1662 = vpop.f32.mrf.mxu0
      %1663 = vdwg.mxu0
      %1666 = vrot.lane.b32.xlu0 %v1419, 8
      %v1667 = vpop.permute.xlu0 %1666
      %1668 = vrot.lane.b32.xlu0 %v1467, 8
      %v1669 = vpop.permute.xlu0 %1668
      %1674 = vrot.lane.b32.xlu0 %v1515, 16
      %v1675 = vpop.permute.xlu0 %1674
      %1676 = vrot.lane.b32.xlu0 %v1563, 16
      %v1677 = vpop.permute.xlu0 %1676
      %1682 = vrot.lane.b32.xlu0 %v1611, 24
      %v1683 = vpop.permute.xlu0 %1682
      %1684 = vrot.lane.b32.xlu0 %v1659, 24
      %v1685 = vpop.permute.xlu0 %1684
      %v1688 = vsel %vm800, %v1323, %v1667
      %v1689 = vsel %vm800, %v1371, %v1669
      %vm1690 = vcmask 130048
      %v1691 = vsel %vm1690, %v1688, %v1675
      %v1692 = vsel %vm1690, %v1689, %v1677
      %vm1693 = vcmask 195584
      %v1694 = vsel %vm1693, %v1691, %v1683
      %v1695 = vsel %vm1693, %v1692, %v1685
      %v1696 = vpack.c.bf16 %v1695, %v1694
      %v1697 = vld [vmem:[%s616] sm:$0xf]
      %v1698 = vld [vmem:[%s616 + $0x4] sm:$0xf]
      %v1699 = vld [vmem:[%s616 + $0x8] sm:$0xf]
      %v1700 = vld [vmem:[%s616 + $0xc] sm:$0xf]
      %v1701 = vld [vmem:[%s619] sm:$0x1]
      %v1703 = vlaneseq
      %v1704 = vshrl.u32 %v1703, 7
      %v1705 = vsub.s32 0, %v1704
      %v1706 = vrot.slane %v1701, %v1705
      %v1712 = vunpack.c.l.b16 %v1697
      %v1713 = vunpack.c.l.b16 %v1698
      %v1714 = vunpack.c.l.b16 %v1699
      %v1715 = vunpack.c.l.b16 %v1700
      %v1716 = vpack.c.b16 %v1713, %v1712
      %v1717 = vpack.c.b16 %v1715, %v1714
      %v1721 = vsel %vm670, %v1696, 0
      %1723 = vmatprep.subr.bf16.mxu0 0
      %1724 = vmatpush1.bf16.msra.mxu0 0
      %1725 = vmatprep.subr.bf16.mxu0 0
      %1726 = vmatpush1.bf16.msra.mxu0 0
      %1727 = vmatprep.subr.bf16.mxu0 0
      %1728 = vmatpush1.bf16.msra.mxu0 0
      %1729 = vmatprep.subr.bf16.mxu0 0
      %1730 = vmatpush1.bf16.msra.mxu0 0
      %1731 = vmatprep.subr.bf16.mxu0 0
      %1732 = vmatpush1.bf16.msra.mxu0 0
      %1733 = vmatprep.subr.bf16.mxu0 0
      %1734 = vmatpush1.bf16.msra.mxu0 0
      %1735 = vmatprep.subr.bf16.mxu0 0
      %1736 = vmatpush1.bf16.msra.mxu0 %v1717
      %1737 = vmatprep.subr.bf16.mxu0 0
      %1738 = vmatpush1.bf16.msra.mxu0 %v1716
      %1739 = vmatprep.subr.bf16.mxu0 0
      %1740 = vmatpush2.bf16.msra.mxu0 0
      %1741 = vmatprep.subr.bf16.mxu0 0
      %1742 = vmatpush2.bf16.msra.mxu0 0
      %1743 = vmatprep.subr.bf16.mxu0 0
      %1744 = vmatpush2.bf16.msra.mxu0 0
      %1745 = vmatprep.subr.bf16.mxu0 0
      %1746 = vmatpush2.bf16.msra.mxu0 0
      %1747 = vmatprep.subr.bf16.mxu0 0
      %1748 = vmatpush2.bf16.msra.mxu0 0
      %1749 = vmatprep.subr.bf16.mxu0 0
      %1750 = vmatpush2.bf16.msra.mxu0 0
      %1751 = vmatprep.subr.bf16.mxu0 0
      %1752 = vmatpush2.bf16.msra.mxu0 0
      %1753 = vmatprep.subr.bf16.mxu0 0
      %1754 = vmatpush2.bf16.msra.mxu0 0
      %1755 = vmatprep.mubr.bf16.mxu0 0
      %1756 = vmatmul.mubr.bf16.gmra.mxu0 %v1721
      %v1757 = vpop.f32.mrf.mxu0
      %v1758 = vadd.f32 %v1706, %v1757
      %v1759 = vpop.f32.mrf.mxu0
      %v1760 = vpop.f32.mrf.mxu0
      %v1761 = vadd.f32 %v1706, %v1760
      %v1762 = vpop.f32.mrf.mxu0
      %1763 = vdwg.mxu0
      %v1764 = vadd.f32 %v660, %v1758
      %v1765 = vadd.f32 %v661, %v1761
      %v1766 = vld [vmem:[%s622] sm:$0x1]
      %v1767 = vld [vmem:[%s625] sm:$0x1]
      %v1768 = vsel %vm670, %v1764, 0.0
      %1769 = vadd.xlane.f32.xlu0 %v1768
      %v1770 = vpop.xlane.xlu0 %1769
      %v1771 = vsel %vm670, %v1765, 0.0
      %1772 = vadd.xlane.f32.xlu0 %v1771
      %v1773 = vpop.xlane.xlu0 %1772
      %v1774 = vmul.f32 %v1770, %v677
      %v1775 = vmul.f32 %v1773, %v677
      %v1776 = vsub.f32 %v1764, %v1774
      %v1777 = vsub.f32 %v1765, %v1775
      %v1778 = vmul.f32 %v1776, %v1776
      %v1779 = vmul.f32 %v1777, %v1777
      %v1780 = vsel %vm670, %v1778, 0.0
      %1781 = vadd.xlane.f32.xlu0 %v1780
      %v1782 = vpop.xlane.xlu0 %1781
      %v1783 = vsel %vm670, %v1779, 0.0
      %1784 = vadd.xlane.f32.xlu0 %v1783
      %v1785 = vpop.xlane.xlu0 %1784
      %v1786 = vmul.f32 %v1782, %v677
      %v1787 = vmul.f32 %v1785, %v677
      %v1788 = vadd.f32 %v1786, 1e-05
      %v1789 = vadd.f32 %v1787, 1e-05
      %v1790 = vrsqrt.pop %v1788
      %v1791 = vrsqrt.pop %v1789
      %v1792 = vmul.f32 %v1776, %v1790
      %v1793 = vmul.f32 %v1777, %v1791
      %v1795 = vlaneseq
      %v1796 = vshrl.u32 %v1795, 7
      %v1797 = vsub.s32 0, %v1796
      %v1798 = vrot.slane %v1766, %v1797
      %v1800 = vmul.f32 %v1792, %v1798
      %v1801 = vmul.f32 %v1793, %v1798
      %v1803 = vlaneseq
      %v1804 = vshrl.u32 %v1803, 7
      %v1805 = vsub.s32 0, %v1804
      %v1806 = vrot.slane %v1767, %v1805
      %v1808 = vadd.f32 %v1800, %v1806
      %v1809 = vadd.f32 %v1801, %v1806
      %v1810 = vpack.c.bf16 %v1809, %v1808
      %v1811 = vld [vmem:[%s630] sm:$0xf]
      %v1812 = vld [vmem:[%s630 + $0x4] sm:$0xf]
      %v1813 = vld [vmem:[%s630 + $0x8] sm:$0xf]
      %v1814 = vld [vmem:[%s630 + $0xc] sm:$0xf]
      %v1815 = vld [vmem:[%s633] sm:$0x1]
      %v1817 = vlaneseq
      %v1818 = vshrl.u32 %v1817, 7
      %v1819 = vsub.s32 0, %v1818
      %v1820 = vrot.slane %v1815, %v1819
      %v1826 = vunpack.c.l.b16 %v1811
      %v1827 = vunpack.c.l.b16 %v1812
      %v1828 = vunpack.c.l.b16 %v1813
      %v1829 = vunpack.c.l.b16 %v1814
      %v1830 = vpack.c.b16 %v1827, %v1826
      %v1831 = vpack.c.b16 %v1829, %v1828
      %v1835 = vsel %vm670, %v1810, 0
      %1837 = vmatprep.subr.bf16.mxu0 0
      %1838 = vmatpush1.bf16.msra.mxu0 0
      %1839 = vmatprep.subr.bf16.mxu0 0
      %1840 = vmatpush1.bf16.msra.mxu0 0
      %1841 = vmatprep.subr.bf16.mxu0 0
      %1842 = vmatpush1.bf16.msra.mxu0 0
      %1843 = vmatprep.subr.bf16.mxu0 0
      %1844 = vmatpush1.bf16.msra.mxu0 0
      %1845 = vmatprep.subr.bf16.mxu0 0
      %1846 = vmatpush1.bf16.msra.mxu0 0
      %1847 = vmatprep.subr.bf16.mxu0 0
      %1848 = vmatpush1.bf16.msra.mxu0 0
      %1849 = vmatprep.subr.bf16.mxu0 0
      %1850 = vmatpush1.bf16.msra.mxu0 %v1831
      %1851 = vmatprep.subr.bf16.mxu0 0
      %1852 = vmatpush1.bf16.msra.mxu0 %v1830
      %1853 = vmatprep.subr.bf16.mxu0 0
      %1854 = vmatpush2.bf16.msra.mxu0 0
      %1855 = vmatprep.subr.bf16.mxu0 0
      %1856 = vmatpush2.bf16.msra.mxu0 0
      %1857 = vmatprep.subr.bf16.mxu0 0
      %1858 = vmatpush2.bf16.msra.mxu0 0
      %1859 = vmatprep.subr.bf16.mxu0 0
      %1860 = vmatpush2.bf16.msra.mxu0 0
      %1861 = vmatprep.subr.bf16.mxu0 0
      %1862 = vmatpush2.bf16.msra.mxu0 0
      %1863 = vmatprep.subr.bf16.mxu0 0
      %1864 = vmatpush2.bf16.msra.mxu0 0
      %1865 = vmatprep.subr.bf16.mxu0 0
      %1866 = vmatpush2.bf16.msra.mxu0 0
      %1867 = vmatprep.subr.bf16.mxu0 0
      %1868 = vmatpush2.bf16.msra.mxu0 0
      %1869 = vmatprep.mubr.bf16.mxu0 0
      %1870 = vmatmul.mubr.bf16.gmra.mxu0 %v1835
      %v1871 = vpop.f32.mrf.mxu0
      %v1872 = vadd.f32 %v1820, %v1871
      %v1873 = vpop.f32.mrf.mxu0
      %v1874 = vpop.f32.mrf.mxu0
      %v1875 = vadd.f32 %v1820, %v1874
      %v1876 = vpop.f32.mrf.mxu0
      %1877 = vdwg.mxu0
      %v1878 = vpack.c.bf16 %v1875, %v1872
      %v1879 = vmul.bf16 %v1878, 1071267802
      %v1880 = vxor.u32 %v1879, 2147516416
      %v1882 = vmul.bf16 %v1880, 1069105081
      %v1883 = vpow.bf16.pop %v1882
      %v1884 = vadd.bf16 %v1883, 1065369472
      %v1885 = vrcp.bf16.pop %v1884
      %v1886 = vmul.bf16 1065369472, %v1885
      %v1887 = vmul.bf16 %v1878, %v1886
      %v1888 = vld [vmem:[%s638] sm:$0xf]
      %v1889 = vld [vmem:[%s638 + $0x4] sm:$0xf]
      %v1890 = vld [vmem:[%s638 + $0x8] sm:$0xf]
      %v1891 = vld [vmem:[%s638 + $0xc] sm:$0xf]
      %v1892 = vld [vmem:[%s638 + $0x10] sm:$0xf]
      %v1893 = vld [vmem:[%s638 + $0x14] sm:$0xf]
      %v1894 = vld [vmem:[%s638 + $0x18] sm:$0xf]
      %v1895 = vld [vmem:[%s638 + $0x1c] sm:$0xf]
      %v1896 = vld [vmem:[%s638 + $0x20] sm:$0xf]
      %v1897 = vld [vmem:[%s638 + $0x24] sm:$0xf]
      %v1898 = vld [vmem:[%s638 + $0x28] sm:$0xf]
      %v1899 = vld [vmem:[%s638 + $0x2c] sm:$0xf]
      %v1900 = vld [vmem:[%s638 + $0x30] sm:$0xf]
      %v1901 = vld [vmem:[%s638 + $0x34] sm:$0xf]
      %v1902 = vld [vmem:[%s638 + $0x38] sm:$0xf]
      %v1903 = vld [vmem:[%s638 + $0x3c] sm:$0xf]
      %v1904 = vld [vmem:[%s641] sm:$0x1]
      %v1906 = vlaneseq
      %v1907 = vshrl.u32 %v1906, 7
      %v1908 = vsub.s32 0, %v1907
      %v1909 = vrot.slane %v1904, %v1908
      %v1927 = vunpack.c.l.b16 %v1888
      %v1928 = vunpack.c.l.b16 %v1889
      %v1929 = vunpack.c.l.b16 %v1890
      %v1930 = vunpack.c.l.b16 %v1891
      %v1931 = vunpack.c.l.b16 %v1892
      %v1932 = vunpack.c.l.b16 %v1893
      %v1933 = vunpack.c.l.b16 %v1894
      %v1934 = vunpack.c.l.b16 %v1895
      %v1935 = vunpack.c.l.b16 %v1896
      %v1936 = vunpack.c.l.b16 %v1897
      %v1937 = vunpack.c.l.b16 %v1898
      %v1938 = vunpack.c.l.b16 %v1899
      %v1939 = vunpack.c.l.b16 %v1900
      %v1940 = vunpack.c.l.b16 %v1901
      %v1941 = vunpack.c.l.b16 %v1902
      %v1942 = vunpack.c.l.b16 %v1903
      %v1943 = vpack.c.b16 %v1928, %v1927
      %v1944 = vpack.c.b16 %v1930, %v1929
      %v1945 = vpack.c.b16 %v1932, %v1931
      %v1946 = vpack.c.b16 %v1934, %v1933
      %v1947 = vpack.c.b16 %v1936, %v1935
      %v1948 = vpack.c.b16 %v1938, %v1937
      %v1949 = vpack.c.b16 %v1940, %v1939
      %v1950 = vpack.c.b16 %v1942, %v1941
      %1959 = vmatprep.subr.bf16.mxu0 0
      %1960 = vmatpush1.bf16.msra.mxu0 %v1950
      %1961 = vmatprep.subr.bf16.mxu0 0
      %1962 = vmatpush1.bf16.msra.mxu0 %v1949
      %1963 = vmatprep.subr.bf16.mxu0 0
      %1964 = vmatpush1.bf16.msra.mxu0 %v1948
      %1965 = vmatprep.subr.bf16.mxu0 0
      %1966 = vmatpush1.bf16.msra.mxu0 %v1947
      %1967 = vmatprep.subr.bf16.mxu0 0
      %1968 = vmatpush1.bf16.msra.mxu0 %v1946
      %1969 = vmatprep.subr.bf16.mxu0 0
      %1970 = vmatpush1.bf16.msra.mxu0 %v1945
      %1971 = vmatprep.subr.bf16.mxu0 0
      %1972 = vmatpush1.bf16.msra.mxu0 %v1944
      %1973 = vmatprep.subr.bf16.mxu0 0
      %1974 = vmatpush1.bf16.msra.mxu0 %v1943
      %1975 = vmatprep.subr.bf16.mxu0 0
      %1976 = vmatpush2.bf16.msra.mxu0 0
      %1977 = vmatprep.subr.bf16.mxu0 0
      %1978 = vmatpush2.bf16.msra.mxu0 0
      %1979 = vmatprep.subr.bf16.mxu0 0
      %1980 = vmatpush2.bf16.msra.mxu0 0
      %1981 = vmatprep.subr.bf16.mxu0 0
      %1982 = vmatpush2.bf16.msra.mxu0 0
      %1983 = vmatprep.subr.bf16.mxu0 0
      %1984 = vmatpush2.bf16.msra.mxu0 0
      %1985 = vmatprep.subr.bf16.mxu0 0
      %1986 = vmatpush2.bf16.msra.mxu0 0
      %1987 = vmatprep.subr.bf16.mxu0 0
      %1988 = vmatpush2.bf16.msra.mxu0 0
      %1989 = vmatprep.subr.bf16.mxu0 0
      %1990 = vmatpush2.bf16.msra.mxu0 0
      %1991 = vmatprep.mubr.bf16.mxu0 0
      %1992 = vmatmul.mubr.bf16.gmra.mxu0 %v1887
      %v1993 = vpop.f32.mrf.mxu0
      %v1994 = vadd.f32 %v1909, %v1993
      %v1995 = vpop.f32.mrf.mxu0
      %v1996 = vpop.f32.mrf.mxu0
      %v1997 = vadd.f32 %v1909, %v1996
      %v1998 = vpop.f32.mrf.mxu0
      %1999 = vdwg.mxu0
      %v2000 = vadd.f32 %v1764, %v1994
      %v2001 = vadd.f32 %v1765, %v1997
      %2002 = vst.msk [vmem:[%s646] sm:$0xff] %vm670, %v2000
      %2003 = vst.msk [vmem:[%s646 + $0x8] sm:$0xff] %vm670, %v2001
      %s2004 = smul.u32 2, %s28
      %p2005 = scmp.lt.s32.totalorder %s2004, 1
      %s2006 = scalar_select %p2005, %s2004, 1
      %s2007 = smul.addr %s2006, 8
      %s2008 = scalar_lea.vmem %s13, %s2007
      // Predicated region
      $region77: #{clip_text_forward.2} parent=71 // pred_check
        %p2009 = pneg %p392
      $region78: #{clip_text_forward.2} parent=71 // pred_check_branch
        %2011 = sbr.rel (%p2009) target = $region80
      $region79: #{clip_text_forward.2} parent=71 // pred_region
        %s2012 = smul.u32 2, %s28
      $region80: #{clip_text_forward.2} parent=71 // pred_fallthru
        _
      // Predicated region
      $region81: #{clip_text_forward.2} parent=71 // pred_check
        %p2013 = pneg %p392
      $region82: #{clip_text_forward.2} parent=71 // pred_check_branch
        %2015 = sbr.rel (%p2013) target = $region84
      $region83: #{clip_text_forward.2} parent=71 // pred_region
        %s2016 = smul.u32 2, %s28
        %p2017 = scmp.lt.s32.totalorder %s2016, 1
        %s2018 = scalar_select %p2017, %s2016, 1
        %s2019 = smul.addr %s2018, 8
        %s2020 = scalar_lea.vmem %s13, %s2019
      $region84: #{clip_text_forward.2} parent=71 // pred_fallthru
        _
    $region72: #{clip_text_forward.2} parent=5 // pred_fallthru
      _
    %p2021 = scmp.le.s32.totalorder 2, %s19
    // Predicated region
    $region85: #{clip_text_forward.2} parent=5 // pred_check
      %p2022 = pneg %p2021
    $region86: #{clip_text_forward.2} parent=5 // pred_check_branch
      %2024 = sbr.rel (%p2022) target = $region88
    $region87: #{clip_text_forward.2} parent=5 // pred_region
      %s2025 = ssub.s32 %s19, 2
    $region88: #{clip_text_forward.2} parent=5 // pred_fallthru
      _
  $region6: #{clip_text_forward.2} parent=0 // loop_footer
    %s23 = sadd.s32 1, %s19
  $region7: #{clip_text_forward.2} parent=0 // loop_footer_branch
    %18 = sbr.rel target = $region3
  $region8: #{clip_text_forward.2} parent=0 // loop_exit
    _

</llo_original>
